<compile_context>
chip_gen: v7x
topology: tpu7x:2x2x1
jax: 0.10.0
libtpu: 0.0.40
codegen_flags: <defaults>
</compile_context>

<pallas_src>
import jax
import jax.numpy as jnp
from jax.experimental import pallas as pl
from jax.experimental.pallas import tpu as pltpu


def wave_kernel(x_ref, w0_ref, b0_ref, w1_ref, b1_ref, w2_ref, b2_ref, o_ref):
    # fc0 + tanh (MXU matmul, f32 accumulate; tanh on the EUP)
    h0 = jnp.tanh(
        jnp.dot(x_ref[...], w0_ref[...], preferred_element_type=jnp.float32)
        + b0_ref[...]
    )
    # fc1 + tanh
    h1 = jnp.tanh(
        jnp.dot(h0, w1_ref[...], preferred_element_type=jnp.float32)
        + b1_ref[...]
    )
    # fc2 (no activation)
    o_ref[...] = (
        jnp.dot(h1, w2_ref[...], preferred_element_type=jnp.float32)
        + b2_ref[...]
    ).astype(o_ref.dtype)


def _round_up(a, m):
    return -(-a // m) * m


def wave_forward(x, params, *, tm=4096, bf16_stream=False):
    """x: [bs, 512] f32 (or bf16). params: transposed weights + biases.

    tm: batch tile (rows per grid step).  bf16_stream: stream x / w0 in bf16
    (f32 accumulation kept).  For a real bandwidth win, feed x already in bf16;
    otherwise the boundary cast is fused into the operand via allow_input_fusion.
    """
    w0, b0 = params["w0"], params["b0"]
    w1, b1 = params["w1"], params["b1"]
    w2, b2 = params["w2"], params["b2"]

    bs, d_in = x.shape
    d_h0, d_h1, d_out = w0.shape[1], w1.shape[1], w2.shape[1]

    if bf16_stream:
        if x.dtype != jnp.bfloat16:
            x = x.astype(jnp.bfloat16)  # fused into the operand (allow_input_fusion)
        w0 = w0.astype(jnp.bfloat16)

    # Batch tile: multiple of 128, capped by the 128-rounded batch.  Ragged
    # batches use a cdiv grid; Pallas masks the partial last block (no padding).
    tm_eff = _round_up(min(max(tm, 128), _round_up(bs, 128)), 128)
    grid = (pl.cdiv(bs, tm_eff),)

    def resident(arr):
        # Full-shape block, constant index map -> stays in VMEM across steps.
        return pl.BlockSpec(arr.shape, lambda i: (0, 0))

    cost = pl.CostEstimate(
        flops=2 * bs * (d_in * d_h0 + d_h0 * d_h1 + d_h1 * d_out),
        transcendentals=bs * (d_h0 + d_h1),
        bytes_accessed=(
            bs * d_in * x.dtype.itemsize
            + bs * d_out * 4
            + d_in * d_h0 * w0.dtype.itemsize
            + (d_h0 * d_h1 + d_h1 * d_out + d_h0 + d_h1 + d_out) * 4
        ),
    )

    compiler_params = pltpu.CompilerParams(
        dimension_semantics=("parallel",),   # 2 TCs on v7x; no-op on v5e/v6e
        vmem_limit_bytes=48 * 1024 * 1024,   # headroom; < v7x 64 MiB per-TC phys
        allow_input_fusion=[True] * 7 if bf16_stream else None,
    )

    return pl.pallas_call(
        wave_kernel,
        out_shape=jax.ShapeDtypeStruct((bs, d_out), jnp.float32),
        grid=grid,
        in_specs=[
            pl.BlockSpec((tm_eff, d_in), lambda i: (i, 0)),  # x: tiled over batch
            resident(w0), resident(b0),
            resident(w1), resident(b1),
            resident(w2), resident(b2),
        ],
        out_specs=pl.BlockSpec((tm_eff, d_out), lambda i: (i, 0)),
        compiler_params=compiler_params,
        cost_estimate=cost,
    )(x, w0, b0, w1, b1, w2, b2)


def init_params(key, n=(512, 64, 8, 2)):
    """Deterministic init mimicking nn.Linear's uniform(-1/sqrt(fan_in), ...).
    Weights stored already transposed to [in, out]; biases as [1, out]."""
    params = {}
    names = [("w0", "b0"), ("w1", "b1"), ("w2", "b2")]
    for i, (wn, bn) in enumerate(names):
        fan_in, fan_out = n[i], n[i + 1]
        key, kw, kb = jax.random.split(key, 3)
        bound = 1.0 / jnp.sqrt(fan_in)
        params[wn] = jax.random.uniform(
            kw, (fan_in, fan_out), jnp.float32, minval=-bound, maxval=bound
        )
        params[bn] = jax.random.uniform(
            kb, (1, fan_out), jnp.float32, minval=-bound, maxval=bound
        )
    return params


def wave_reference(x, params):
    """Pure-JAX reference for correctness checking."""
    h = jnp.tanh(x @ params["w0"] + params["b0"])
    h = jnp.tanh(h @ params["w1"] + params["b1"])
    return h @ params["w2"] + params["b2"]


if __name__ == "__main__":
    key = jax.random.PRNGKey(0)
    key, kx = jax.random.split(key)

    n = (512, 64, 8, 2)
    bs = 200  # deliberately NOT a tile multiple: exercises the ragged last block
    x = jax.random.normal(kx, (bs, n[0]), dtype=jnp.float32)
    params = init_params(key, n)
    ref = wave_reference(x, params)

    # f32 path, small tile so the grid has >1 step and a masked ragged tail.
    out = jax.block_until_ready(wave_forward(x, params, tm=128))
    assert out.shape == (bs, n[-1]), out.shape
    assert jnp.allclose(out, ref, atol=1e-5, rtol=1e-5), float(
        jnp.max(jnp.abs(out - ref))
    )

    # Default (large-tile) path: single partial block.
    out2 = jax.block_until_ready(wave_forward(x, params))
    assert jnp.allclose(out2, ref, atol=1e-5, rtol=1e-5), float(
        jnp.max(jnp.abs(out2 - ref))
    )

    # bf16 streaming path (halves the dominant x read stream; f32 accumulate).
    out_bf16 = jax.block_until_ready(wave_forward(x, params, bf16_stream=True))
    assert out_bf16.shape == (bs, n[-1])
    assert bool(jnp.all(jnp.isfinite(out_bf16)))
    assert float(jnp.max(jnp.abs(out_bf16 - ref))) < 0.25  # loose: bf16 inputs

    print("KERNEL_OK")
</pallas_src>

<mosaic_0001>
module attributes {stable_mosaic.version = 11 : i64} {
  func.func @wave_kernel(%arg0: i32, %arg1: memref<128x512xf32, #tpu.memory_space<vmem>>, %arg2: memref<512x64xf32, #tpu.memory_space<vmem>>, %arg3: memref<1x64xf32, #tpu.memory_space<vmem>>, %arg4: memref<64x8xf32, #tpu.memory_space<vmem>>, %arg5: memref<1x8xf32, #tpu.memory_space<vmem>>, %arg6: memref<8x2xf32, #tpu.memory_space<vmem>>, %arg7: memref<1x2xf32, #tpu.memory_space<vmem>>, %arg8: memref<128x2xf32, #tpu.memory_space<vmem>>) attributes {dimension_semantics = [#tpu.dimension_semantics<parallel>], iteration_bounds = array<i64: 2>, scalar_prefetch = 0 : i64, scratch_operands = 0 : i64, tpu.core_type = #tpu.core_type<tc>, window_params = [{transform_indices = @transform_0, window_bounds = array<i64: 128, 512>}, {pipeline_mode = #tpu.pipeline_mode<synchronous>, transform_indices = @transform_1, window_bounds = array<i64: 512, 64>}, {pipeline_mode = #tpu.pipeline_mode<synchronous>, transform_indices = @transform_2, window_bounds = array<i64: 1, 64>}, {pipeline_mode = #tpu.pipeline_mode<synchronous>, transform_indices = @transform_3, window_bounds = array<i64: 64, 8>}, {pipeline_mode = #tpu.pipeline_mode<synchronous>, transform_indices = @transform_4, window_bounds = array<i64: 1, 8>}, {pipeline_mode = #tpu.pipeline_mode<synchronous>, transform_indices = @transform_5, window_bounds = array<i64: 8, 2>}, {pipeline_mode = #tpu.pipeline_mode<synchronous>, transform_indices = @transform_6, window_bounds = array<i64: 1, 2>}, {transform_indices = @transform_7, window_bounds = array<i64: 128, 2>}]} {
    %c0 = arith.constant 0 : index
    %c0_0 = arith.constant 0 : index
    %0 = vector.load %arg1[%c0, %c0_0] : memref<128x512xf32, #tpu.memory_space<vmem>>, vector<128x512xf32>
    %c0_1 = arith.constant 0 : index
    %c0_2 = arith.constant 0 : index
    %1 = vector.load %arg2[%c0_1, %c0_2] : memref<512x64xf32, #tpu.memory_space<vmem>>, vector<512x64xf32>
    %cst = arith.constant dense<0.000000e+00> : vector<128x64xf32>
    %2 = tpu.matmul %0, %1, %cst {dimension_numbers = #tpu.dot_dimension_numbers<[1], [0], [0], [1], [0, 0, 1, 1], [], []>} : vector<128x512xf32>, vector<512x64xf32>, vector<128x64xf32> -> vector<128x64xf32>
    %c0_3 = arith.constant 0 : index
    %c0_4 = arith.constant 0 : index
    %3 = vector.load %arg3[%c0_3, %c0_4] : memref<1x64xf32, #tpu.memory_space<vmem>>, vector<1x64xf32>
    %4 = vector.broadcast %3 : vector<1x64xf32> to vector<128x64xf32>
    %5 = arith.addf %2, %4 : vector<128x64xf32>
    %6 = math.tanh %5 : vector<128x64xf32>
    %c0_5 = arith.constant 0 : index
    %c0_6 = arith.constant 0 : index
    %7 = vector.load %arg4[%c0_5, %c0_6] : memref<64x8xf32, #tpu.memory_space<vmem>>, vector<64x8xf32>
    %cst_7 = arith.constant dense<0.000000e+00> : vector<128x8xf32>
    %8 = tpu.matmul %6, %7, %cst_7 {dimension_numbers = #tpu.dot_dimension_numbers<[1], [0], [0], [1], [0, 0, 1, 1], [], []>} : vector<128x64xf32>, vector<64x8xf32>, vector<128x8xf32> -> vector<128x8xf32>
    %c0_8 = arith.constant 0 : index
    %c0_9 = arith.constant 0 : index
    %9 = vector.load %arg5[%c0_8, %c0_9] : memref<1x8xf32, #tpu.memory_space<vmem>>, vector<1x8xf32>
    %10 = vector.broadcast %9 : vector<1x8xf32> to vector<128x8xf32>
    %11 = arith.addf %8, %10 : vector<128x8xf32>
    %12 = math.tanh %11 : vector<128x8xf32>
    %c0_10 = arith.constant 0 : index
    %c0_11 = arith.constant 0 : index
    %13 = vector.load %arg6[%c0_10, %c0_11] : memref<8x2xf32, #tpu.memory_space<vmem>>, vector<8x2xf32>
    %cst_12 = arith.constant dense<0.000000e+00> : vector<128x2xf32>
    %14 = tpu.matmul %12, %13, %cst_12 {dimension_numbers = #tpu.dot_dimension_numbers<[1], [0], [0], [1], [0, 0, 1, 1], [], []>} : vector<128x8xf32>, vector<8x2xf32>, vector<128x2xf32> -> vector<128x2xf32>
    %c0_13 = arith.constant 0 : index
    %c0_14 = arith.constant 0 : index
    %15 = vector.load %arg7[%c0_13, %c0_14] : memref<1x2xf32, #tpu.memory_space<vmem>>, vector<1x2xf32>
    %16 = vector.broadcast %15 : vector<1x2xf32> to vector<128x2xf32>
    %17 = arith.addf %14, %16 : vector<128x2xf32>
    %c0_15 = arith.constant 0 : index
    %c0_16 = arith.constant 0 : index
    %18 = vector.load %arg8[%c0_15, %c0_16] : memref<128x2xf32, #tpu.memory_space<vmem>>, vector<128x2xf32>
    tpu.vector_store %arg8[%c0_15, %c0_16], %17 {strides = array<i32>} : memref<128x2xf32, #tpu.memory_space<vmem>>, vector<128x2xf32>,
    return
  }
  func.func @transform_0(%arg0: i32) -> (i32, i32) {
    %c0_i32 = arith.constant 0 : i32
    %c0_i32_0 = arith.constant 0 : i32
    return %arg0, %c0_i32 : i32, i32
  }
  func.func @transform_1(%arg0: i32) -> (i32, i32) {
    %c0_i32 = arith.constant 0 : i32
    %c0_i32_0 = arith.constant 0 : i32
    %c0_i32_1 = arith.constant 0 : i32
    return %c0_i32, %c0_i32_0 : i32, i32
  }
  func.func @transform_2(%arg0: i32) -> (i32, i32) {
    %c0_i32 = arith.constant 0 : i32
    %c0_i32_0 = arith.constant 0 : i32
    %c0_i32_1 = arith.constant 0 : i32
    return %c0_i32, %c0_i32_0 : i32, i32
  }
  func.func @transform_3(%arg0: i32) -> (i32, i32) {
    %c0_i32 = arith.constant 0 : i32
    %c0_i32_0 = arith.constant 0 : i32
    %c0_i32_1 = arith.constant 0 : i32
    return %c0_i32, %c0_i32_0 : i32, i32
  }
  func.func @transform_4(%arg0: i32) -> (i32, i32) {
    %c0_i32 = arith.constant 0 : i32
    %c0_i32_0 = arith.constant 0 : i32
    %c0_i32_1 = arith.constant 0 : i32
    return %c0_i32, %c0_i32_0 : i32, i32
  }
  func.func @transform_5(%arg0: i32) -> (i32, i32) {
    %c0_i32 = arith.constant 0 : i32
    %c0_i32_0 = arith.constant 0 : i32
    %c0_i32_1 = arith.constant 0 : i32
    return %c0_i32, %c0_i32_0 : i32, i32
  }
  func.func @transform_6(%arg0: i32) -> (i32, i32) {
    %c0_i32 = arith.constant 0 : i32
    %c0_i32_0 = arith.constant 0 : i32
    %c0_i32_1 = arith.constant 0 : i32
    return %c0_i32, %c0_i32_0 : i32, i32
  }
  func.func @transform_7(%arg0: i32) -> (i32, i32) {
    %c0_i32 = arith.constant 0 : i32
    %c0_i32_0 = arith.constant 0 : i32
    return %arg0, %c0_i32 : i32, i32
  }
}

</mosaic_0001>

<llo_original>
// kernel: tpu_custom_call.1
$region0: #{tpu_custom_call.1}
  #allocation0 [shape = 'u32[]', space=smem, size = 0x4, offset = 0x4, fixed_abs, tag = 'smem constant byte address 0x4 - core index']
  #allocation1 [shape = 'u32[144,128]{1,0:T(1,128)}', space=vmem, size = 0x12000, scoped, tag = 'internal scratch']
  %s0 = inlined_call_operand.vmem [shape: f32[200,512], index: 0, kind: input, shape index: {}]
  %s1 = inlined_call_operand.vmem [shape: f32[512,64], index: 1, kind: input, shape index: {}]
  %s2 = inlined_call_operand.vmem [shape: f32[1,64], index: 2, kind: input, shape index: {}]
  %s3 = inlined_call_operand.vmem [shape: f32[64,8], index: 3, kind: input, shape index: {}]
  %s4 = inlined_call_operand.vmem [shape: f32[1,8], index: 4, kind: input, shape index: {}]
  %s5 = inlined_call_operand.vmem [shape: f32[8,2], index: 5, kind: input, shape index: {}]
  %s6 = inlined_call_operand.vmem [shape: f32[1,2], index: 6, kind: input, shape index: {}]
  %s7 = inlined_call_operand.vmem [shape: f32[200,2], index: 7, kind: output, shape index: {}]
  %s8 = sld [smem:[#allocation0]]
  $region109: #{tpu_custom_call.1} parent=0
    _
  %s10 = ssub.s32 1, %s8
  %s11 = scalar_select 0, %s10, %s8
  $region1: #{tpu_custom_call.1} parent=0
    #allocation2 [shape = 'u8[131072]{0}', space=vmem, size = 0x20000, scoped, tag = 'output window, operand 0']
    loop: start=0, step=1, limit=4
    $region2: #{tpu_custom_call.1} parent=1 // loop_pre_header
      _
    $region3: #{tpu_custom_call.1} parent=1 // loop_header
      %s13 = sphi 0, %s17
      %p14 = scmp.ge.s32.totalorder %s13, 4
      %s23 = sphi 0, %s25
      %s26 = sphi 0, %s23
      %s27 = sphi 0, %s26
      %s43 = sphi 0, %s27
      %s47 = sphi 0, %s47
      %s49 = sphi 0, %s47
      %s50 = sphi 0, %s49
      %s64 = sphi 0, %s50
      %s68 = sphi 0, %s68
      %s70 = sphi 0, %s68
      %s71 = sphi 0, %s70
      %s85 = sphi 0, %s71
      %s89 = sphi 0, %s89
      %s91 = sphi 0, %s89
      %s92 = sphi 0, %s91
      %s106 = sphi 0, %s92
      %s110 = sphi 0, %s110
      %s112 = sphi 0, %s110
      %s113 = sphi 0, %s112
      %s127 = sphi 0, %s113
      %s131 = sphi 0, %s131
      %s133 = sphi 0, %s131
      %s134 = sphi 0, %s133
      %s148 = sphi 0, %s134
      %s152 = sphi 0, %s152
      %s154 = sphi 0, %s152
      %s155 = sphi 0, %s154
      %s169 = sphi 0, %s155
      %s175 = sphi 0, %s177
      %s178 = sphi 0, %s175
      %s179 = sphi 0, %s178
      %s195 = sphi 0, %s179
    $region4: #{tpu_custom_call.1} parent=1 // loop_header_branch
      %16 = sbr.rel (%p14) target = $region8
    $region5: #{tpu_custom_call.1} parent=1 // loop_body
      %s18 = ssub.s32 %s13, 1
      %s19 = ssub.s32 %s13, 2
      %s20 = sadd.s32 %s13, 1
      %s21 = ssub.s32 %s13, %s20
      %p22 = scmp.eq.s32.totalorder %s21, 0
      %s24 = sadd.s32 %s23, 1
      %s25 = scalar_select %p22, %s23, %s24
      %p28 = pneg %p22
      %p29 = scmp.eq.s32.totalorder %s13, 1
      %p30 = por %p28, %p29
      %p31 = scmp.ne.s32.totalorder %s23, %s26
      %p32 = scmp.eq.s32.totalorder %s13, 0
      %p33 = por %p31, %p32
      %p34 = scmp.ne.s32.totalorder %s23, %s26
      %p35 = scmp.eq.s32.totalorder %s18, 1
      %p36 = por %p34, %p35
      %p37 = scmp.ne.s32.totalorder %s26, %s27
      %p38 = scmp.eq.s32.totalorder %s18, 0
      %p39 = por %p37, %p38
      %p40 = scmp.ne.s32.totalorder %s26, %s27
      %p41 = scmp.eq.s32.totalorder %s19, 1
      %p42 = por %p40, %p41
      %p44 = scmp.ne.s32.totalorder %s27, %s43
      %p45 = scmp.eq.s32.totalorder %s19, 0
      %p46 = por %p44, %p45
      %s48 = sadd.s32 %s47, 1
      %p51 = scmp.eq.s32.totalorder %s13, 1
      %p52 = scmp.ne.s32.totalorder %s47, %s49
      %p53 = scmp.eq.s32.totalorder %s13, 0
      %p54 = por %p52, %p53
      %p55 = scmp.ne.s32.totalorder %s47, %s49
      %p56 = scmp.eq.s32.totalorder %s18, 1
      %p57 = por %p55, %p56
      %p58 = scmp.ne.s32.totalorder %s49, %s50
      %p59 = scmp.eq.s32.totalorder %s18, 0
      %p60 = por %p58, %p59
      %p61 = scmp.ne.s32.totalorder %s49, %s50
      %p62 = scmp.eq.s32.totalorder %s19, 1
      %p63 = por %p61, %p62
      %p65 = scmp.ne.s32.totalorder %s50, %s64
      %p66 = scmp.eq.s32.totalorder %s19, 0
      %p67 = por %p65, %p66
      %s69 = sadd.s32 %s68, 1
      %p72 = scmp.eq.s32.totalorder %s13, 1
      %p73 = scmp.ne.s32.totalorder %s68, %s70
      %p74 = scmp.eq.s32.totalorder %s13, 0
      %p75 = por %p73, %p74
      %p76 = scmp.ne.s32.totalorder %s68, %s70
      %p77 = scmp.eq.s32.totalorder %s18, 1
      %p78 = por %p76, %p77
      %p79 = scmp.ne.s32.totalorder %s70, %s71
      %p80 = scmp.eq.s32.totalorder %s18, 0
      %p81 = por %p79, %p80
      %p82 = scmp.ne.s32.totalorder %s70, %s71
      %p83 = scmp.eq.s32.totalorder %s19, 1
      %p84 = por %p82, %p83
      %p86 = scmp.ne.s32.totalorder %s71, %s85
      %p87 = scmp.eq.s32.totalorder %s19, 0
      %p88 = por %p86, %p87
      %s90 = sadd.s32 %s89, 1
      %p93 = scmp.eq.s32.totalorder %s13, 1
      %p94 = scmp.ne.s32.totalorder %s89, %s91
      %p95 = scmp.eq.s32.totalorder %s13, 0
      %p96 = por %p94, %p95
      %p97 = scmp.ne.s32.totalorder %s89, %s91
      %p98 = scmp.eq.s32.totalorder %s18, 1
      %p99 = por %p97, %p98
      %p100 = scmp.ne.s32.totalorder %s91, %s92
      %p101 = scmp.eq.s32.totalorder %s18, 0
      %p102 = por %p100, %p101
      %p103 = scmp.ne.s32.totalorder %s91, %s92
      %p104 = scmp.eq.s32.totalorder %s19, 1
      %p105 = por %p103, %p104
      %p107 = scmp.ne.s32.totalorder %s92, %s106
      %p108 = scmp.eq.s32.totalorder %s19, 0
      %p109 = por %p107, %p108
      %s111 = sadd.s32 %s110, 1
      %p114 = scmp.eq.s32.totalorder %s13, 1
      %p115 = scmp.ne.s32.totalorder %s110, %s112
      %p116 = scmp.eq.s32.totalorder %s13, 0
      %p117 = por %p115, %p116
      %p118 = scmp.ne.s32.totalorder %s110, %s112
      %p119 = scmp.eq.s32.totalorder %s18, 1
      %p120 = por %p118, %p119
      %p121 = scmp.ne.s32.totalorder %s112, %s113
      %p122 = scmp.eq.s32.totalorder %s18, 0
      %p123 = por %p121, %p122
      %p124 = scmp.ne.s32.totalorder %s112, %s113
      %p125 = scmp.eq.s32.totalorder %s19, 1
      %p126 = por %p124, %p125
      %p128 = scmp.ne.s32.totalorder %s113, %s127
      %p129 = scmp.eq.s32.totalorder %s19, 0
      %p130 = por %p128, %p129
      %s132 = sadd.s32 %s131, 1
      %p135 = scmp.eq.s32.totalorder %s13, 1
      %p136 = scmp.ne.s32.totalorder %s131, %s133
      %p137 = scmp.eq.s32.totalorder %s13, 0
      %p138 = por %p136, %p137
      %p139 = scmp.ne.s32.totalorder %s131, %s133
      %p140 = scmp.eq.s32.totalorder %s18, 1
      %p141 = por %p139, %p140
      %p142 = scmp.ne.s32.totalorder %s133, %s134
      %p143 = scmp.eq.s32.totalorder %s18, 0
      %p144 = por %p142, %p143
      %p145 = scmp.ne.s32.totalorder %s133, %s134
      %p146 = scmp.eq.s32.totalorder %s19, 1
      %p147 = por %p145, %p146
      %p149 = scmp.ne.s32.totalorder %s134, %s148
      %p150 = scmp.eq.s32.totalorder %s19, 0
      %p151 = por %p149, %p150
      %s153 = sadd.s32 %s152, 1
      %p156 = scmp.eq.s32.totalorder %s13, 1
      %p157 = scmp.ne.s32.totalorder %s152, %s154
      %p158 = scmp.eq.s32.totalorder %s13, 0
      %p159 = por %p157, %p158
      %p160 = scmp.ne.s32.totalorder %s152, %s154
      %p161 = scmp.eq.s32.totalorder %s18, 1
      %p162 = por %p160, %p161
      %p163 = scmp.ne.s32.totalorder %s154, %s155
      %p164 = scmp.eq.s32.totalorder %s18, 0
      %p165 = por %p163, %p164
      %p166 = scmp.ne.s32.totalorder %s154, %s155
      %p167 = scmp.eq.s32.totalorder %s19, 1
      %p168 = por %p166, %p167
      %p170 = scmp.ne.s32.totalorder %s155, %s169
      %p171 = scmp.eq.s32.totalorder %s19, 0
      %p172 = por %p170, %p171
      %s173 = ssub.s32 %s13, %s20
      %p174 = scmp.eq.s32.totalorder %s173, 0
      %s176 = sadd.s32 %s175, 1
      %s177 = scalar_select %p174, %s175, %s176
      %p180 = pneg %p174
      %p181 = scmp.eq.s32.totalorder %s13, 1
      %p182 = por %p180, %p181
      %p183 = scmp.ne.s32.totalorder %s175, %s178
      %p184 = scmp.eq.s32.totalorder %s13, 0
      %p185 = por %p183, %p184
      %p186 = scmp.ne.s32.totalorder %s175, %s178
      %p187 = scmp.eq.s32.totalorder %s18, 1
      %p188 = por %p186, %p187
      %p189 = scmp.ne.s32.totalorder %s178, %s179
      %p190 = scmp.eq.s32.totalorder %s18, 0
      %p191 = por %p189, %p190
      %p192 = scmp.ne.s32.totalorder %s178, %s179
      %p193 = scmp.eq.s32.totalorder %s19, 1
      %p194 = por %p192, %p193
      %p196 = scmp.ne.s32.totalorder %s179, %s195
      %p197 = scmp.eq.s32.totalorder %s19, 0
      %p198 = por %p196, %p197
      %p199 = scmp.le.s32.totalorder 1, %s13
      %p200 = scmp.lt.s32.totalorder %s13, 3
      %p201 = pnand %p199, %p200
      %p202 = pneg %p201
      // Predicated region
      $region9: #{tpu_custom_call.1} parent=5 // pred_check
        _
      $region10: #{tpu_custom_call.1} parent=5 // pred_check_branch
        %204 = sbr.rel (%p201) target = $region12
      $region11: #{tpu_custom_call.1} parent=5 // pred_region
        %s205 = ssub.s32 %s13, 1
        // Predicated region
        $region13: #{tpu_custom_call.1} parent=11 // pred_check
          %p206 = pneg %p60
        $region14: #{tpu_custom_call.1} parent=11 // pred_check_branch
          %208 = sbr.rel (%p206) target = $region16
        $region15: #{tpu_custom_call.1} parent=11 // pred_region
          _
        $region16: #{tpu_custom_call.1} parent=11 // pred_fallthru
          _
        // Predicated region
        $region17: #{tpu_custom_call.1} parent=11 // pred_check
          %p209 = pneg %p81
        $region18: #{tpu_custom_call.1} parent=11 // pred_check_branch
          %211 = sbr.rel (%p209) target = $region20
        $region19: #{tpu_custom_call.1} parent=11 // pred_region
          _
        $region20: #{tpu_custom_call.1} parent=11 // pred_fallthru
          _
        // Predicated region
        $region21: #{tpu_custom_call.1} parent=11 // pred_check
          %p212 = pneg %p102
        $region22: #{tpu_custom_call.1} parent=11 // pred_check_branch
          %214 = sbr.rel (%p212) target = $region24
        $region23: #{tpu_custom_call.1} parent=11 // pred_region
          _
        $region24: #{tpu_custom_call.1} parent=11 // pred_fallthru
          _
        // Predicated region
        $region25: #{tpu_custom_call.1} parent=11 // pred_check
          %p215 = pneg %p123
        $region26: #{tpu_custom_call.1} parent=11 // pred_check_branch
          %217 = sbr.rel (%p215) target = $region28
        $region27: #{tpu_custom_call.1} parent=11 // pred_region
          _
        $region28: #{tpu_custom_call.1} parent=11 // pred_fallthru
          _
        // Predicated region
        $region29: #{tpu_custom_call.1} parent=11 // pred_check
          %p218 = pneg %p144
        $region30: #{tpu_custom_call.1} parent=11 // pred_check_branch
          %220 = sbr.rel (%p218) target = $region32
        $region31: #{tpu_custom_call.1} parent=11 // pred_region
          _
        $region32: #{tpu_custom_call.1} parent=11 // pred_fallthru
          _
        // Predicated region
        $region33: #{tpu_custom_call.1} parent=11 // pred_check
          %p221 = pneg %p165
        $region34: #{tpu_custom_call.1} parent=11 // pred_check_branch
          %223 = sbr.rel (%p221) target = $region36
        $region35: #{tpu_custom_call.1} parent=11 // pred_region
          _
        $region36: #{tpu_custom_call.1} parent=11 // pred_fallthru
          _
      $region12: #{tpu_custom_call.1} parent=5 // pred_fallthru
        _
      %p224 = scmp.lt.s32.totalorder %s13, 2
      // Predicated region
      $region37: #{tpu_custom_call.1} parent=5 // pred_check
        %p225 = pneg %p224
      $region38: #{tpu_custom_call.1} parent=5 // pred_check_branch
        %227 = sbr.rel (%p225) target = $region40
      $region39: #{tpu_custom_call.1} parent=5 // pred_region
        // Predicated region
        $region41: #{tpu_custom_call.1} parent=39 // pred_check
          %p228 = pneg %p33
        $region42: #{tpu_custom_call.1} parent=39 // pred_check_branch
          %230 = sbr.rel (%p228) target = $region44
        $region43: #{tpu_custom_call.1} parent=39 // pred_region
          %s231 = smul.u32 16, %s13
          %s232 = ssub.s32 25, %s231
          %p233 = scmp.lt.s32.totalorder %s232, 16
          %s234 = scalar_select %p233, %s232, 16
          %s235 = smul.u32 128, %s234
          %s236 = smul.u32 %s235, 4
          %p237 = scmp.lt.s32.totalorder %s231, 24
          %s238 = scalar_select %p237, %s231, 24
          %s239 = smul.addr %s238, 4
          %s240 = smul.addr %s239, 8
          %s241 = scalar_lea.vmem %s0, %s240
          %s242 = smul.u32 16, %s13
          %s243 = ssub.s32 25, %s242
          %p244 = scmp.lt.s32.totalorder %s243, 16
          %s245 = scalar_select %p244, %s243, 16
          %s246 = smul.u32 128, %s245
          %s247 = smul.u32 %s246, 4
        $region44: #{tpu_custom_call.1} parent=39 // pred_fallthru
          _
      $region40: #{tpu_custom_call.1} parent=5 // pred_fallthru
        _
      %p248 = scmp.le.s32.totalorder 1, %s13
      %p249 = scmp.lt.s32.totalorder %s13, 3
      %p250 = pnand %p248, %p249
      %p251 = pneg %p250
      // Predicated region
      $region45: #{tpu_custom_call.1} parent=5 // pred_check
        _
      $region46: #{tpu_custom_call.1} parent=5 // pred_check_branch
        %253 = sbr.rel (%p250) target = $region48
      $region47: #{tpu_custom_call.1} parent=5 // pred_region
        %s254 = ssub.s32 %s13, 1
        %s255 = smul.u32 16, %s18
        %s256 = ssub.s32 25, %s255
        %p257 = scmp.lt.s32.totalorder %s256, 16
        %s258 = scalar_select %p257, %s256, 16
        %s259 = smul.u32 128, %s258
        %s260 = smul.u32 %s259, 4
        %p261 = scmp.lt.s32.totalorder %s255, 24
        %s262 = scalar_select %p261, %s255, 24
        %s263 = smul.addr %s262, 4
        %s264 = smul.addr %s263, 8
        %s265 = scalar_lea.vmem %s0, %s264
        %p266 = pneg %p39
        %p267 = pneg %p36
        %p268 = pneg %p60
        %p269 = pneg %p57
        %p270 = pneg %p81
        %p271 = pneg %p78
        %p272 = pneg %p102
        %p273 = pneg %p99
        %p274 = pneg %p123
        %p275 = pneg %p120
        %p276 = pneg %p144
        %p277 = pneg %p141
        %p278 = pneg %p165
        %p279 = pneg %p162
        %p280 = pneg %p191
        %p281 = pneg %p188
        %s282 = sand.u32 %s178, 1
        %s283 = sand.u32 %s178, 1
        %s284 = smul.addr %s283, 128
        %s285 = scalar_lea.vmem [#allocation2], %s284
        %s286 = smul.u32 16, %s18
        %s287 = ssub.s32 25, %s286
        %p288 = scmp.lt.s32.totalorder %s287, 16
        %s289 = scalar_select %p288, %s287, 16
        %s290 = smul.u32 128, %s289
        %s291 = smul.u32 %s290, 4
        %p292 = scmp.lt.s32.totalorder %s286, 24
        %s293 = scalar_select %p292, %s286, 24
        %s294 = smul.addr %s293, 4
        %s295 = smul.addr %s294, 8
        %s296 = scalar_lea.vmem %s0, %s295
        %s297 = smul.u32 16, %s18
        %s298 = ssub.s32 25, %s297
        %p299 = scmp.lt.s32.totalorder %s298, 16
        %s300 = scalar_select %p299, %s298, 16
        %s301 = smul.u32 128, %s300
        %s302 = smul.u32 %s301, 4
        %s303 = smul.u32 16, %s18
        %s304 = ssub.s32 25, %s303
        %p305 = scmp.lt.s32.totalorder %s304, 16
        %s306 = scalar_select %p305, %s304, 16
        %s307 = smul.u32 128, %s306
        %v308 = vld [vmem:[%s296] sm:$0xff]
        %v309 = vld [vmem:[%s296 + $0x8] sm:$0xff]
        %v310 = vld [vmem:[%s296 + $0x10] sm:$0xff]
        %v311 = vld [vmem:[%s296 + $0x18] sm:$0xff]
        %v312 = vld [vmem:[%s296 + $0x20] sm:$0xff]
        %v313 = vld [vmem:[%s296 + $0x28] sm:$0xff]
        %v314 = vld [vmem:[%s296 + $0x30] sm:$0xff]
        %v315 = vld [vmem:[%s296 + $0x38] sm:$0xff]
        %v316 = vld [vmem:[%s296 + $0x40] sm:$0xff]
        %v317 = vld [vmem:[%s296 + $0x48] sm:$0xff]
        %v318 = vld [vmem:[%s296 + $0x50] sm:$0xff]
        %v319 = vld [vmem:[%s296 + $0x58] sm:$0xff]
        %v320 = vld [vmem:[%s296 + $0x60] sm:$0xff]
        %v321 = vld [vmem:[%s296 + $0x68] sm:$0xff]
        %v322 = vld [vmem:[%s296 + $0x70] sm:$0xff]
        %v323 = vld [vmem:[%s296 + $0x78] sm:$0xff]
        %v324 = vld [vmem:[%s296 + $0x80] sm:$0xff]
        %v325 = vld [vmem:[%s296 + $0x88] sm:$0xff]
        %v326 = vld [vmem:[%s296 + $0x90] sm:$0xff]
        %v327 = vld [vmem:[%s296 + $0x98] sm:$0xff]
        %v328 = vld [vmem:[%s296 + $0xa0] sm:$0xff]
        %v329 = vld [vmem:[%s296 + $0xa8] sm:$0xff]
        %v330 = vld [vmem:[%s296 + $0xb0] sm:$0xff]
        %v331 = vld [vmem:[%s296 + $0xb8] sm:$0xff]
        %v332 = vld [vmem:[%s296 + $0xc0] sm:$0xff]
        %v333 = vld [vmem:[%s296 + $0xc8] sm:$0xff]
        %v334 = vld [vmem:[%s296 + $0xd0] sm:$0xff]
        %v335 = vld [vmem:[%s296 + $0xd8] sm:$0xff]
        %v336 = vld [vmem:[%s296 + $0xe0] sm:$0xff]
        %v337 = vld [vmem:[%s296 + $0xe8] sm:$0xff]
        %v338 = vld [vmem:[%s296 + $0xf0] sm:$0xff]
        %v339 = vld [vmem:[%s296 + $0xf8] sm:$0xff]
        %v340 = vld [vmem:[%s296 + $0x100] sm:$0xff]
        %v341 = vld [vmem:[%s296 + $0x108] sm:$0xff]
        %v342 = vld [vmem:[%s296 + $0x110] sm:$0xff]
        %v343 = vld [vmem:[%s296 + $0x118] sm:$0xff]
        %v344 = vld [vmem:[%s296 + $0x120] sm:$0xff]
        %v345 = vld [vmem:[%s296 + $0x128] sm:$0xff]
        %v346 = vld [vmem:[%s296 + $0x130] sm:$0xff]
        %v347 = vld [vmem:[%s296 + $0x138] sm:$0xff]
        %v348 = vld [vmem:[%s296 + $0x140] sm:$0xff]
        %v349 = vld [vmem:[%s296 + $0x148] sm:$0xff]
        %v350 = vld [vmem:[%s296 + $0x150] sm:$0xff]
        %v351 = vld [vmem:[%s296 + $0x158] sm:$0xff]
        %v352 = vld [vmem:[%s296 + $0x160] sm:$0xff]
        %v353 = vld [vmem:[%s296 + $0x168] sm:$0xff]
        %v354 = vld [vmem:[%s296 + $0x170] sm:$0xff]
        %v355 = vld [vmem:[%s296 + $0x178] sm:$0xff]
        %v356 = vld [vmem:[%s296 + $0x180] sm:$0xff]
        %v357 = vld [vmem:[%s296 + $0x188] sm:$0xff]
        %v358 = vld [vmem:[%s296 + $0x190] sm:$0xff]
        %v359 = vld [vmem:[%s296 + $0x198] sm:$0xff]
        %v360 = vld [vmem:[%s296 + $0x1a0] sm:$0xff]
        %v361 = vld [vmem:[%s296 + $0x1a8] sm:$0xff]
        %v362 = vld [vmem:[%s296 + $0x1b0] sm:$0xff]
        %v363 = vld [vmem:[%s296 + $0x1b8] sm:$0xff]
        %v364 = vld [vmem:[%s296 + $0x1c0] sm:$0xff]
        %v365 = vld [vmem:[%s296 + $0x1c8] sm:$0xff]
        %v366 = vld [vmem:[%s296 + $0x1d0] sm:$0xff]
        %v367 = vld [vmem:[%s296 + $0x1d8] sm:$0xff]
        %v368 = vld [vmem:[%s296 + $0x1e0] sm:$0xff]
        %v369 = vld [vmem:[%s296 + $0x1e8] sm:$0xff]
        %v370 = vld [vmem:[%s296 + $0x1f0] sm:$0xff]
        %v371 = vld [vmem:[%s296 + $0x1f8] sm:$0xff]
        %v372 = vld [vmem:[%s1] sm:$0xff]
        %v373 = vld [vmem:[%s1 + $0x8] sm:$0xff]
        %v374 = vld [vmem:[%s1 + $0x10] sm:$0xff]
        %v375 = vld [vmem:[%s1 + $0x18] sm:$0xff]
        %v376 = vld [vmem:[%s1 + $0x20] sm:$0xff]
        %v377 = vld [vmem:[%s1 + $0x28] sm:$0xff]
        %v378 = vld [vmem:[%s1 + $0x30] sm:$0xff]
        %v379 = vld [vmem:[%s1 + $0x38] sm:$0xff]
        %v380 = vld [vmem:[%s1 + $0x40] sm:$0xff]
        %v381 = vld [vmem:[%s1 + $0x48] sm:$0xff]
        %v382 = vld [vmem:[%s1 + $0x50] sm:$0xff]
        %v383 = vld [vmem:[%s1 + $0x58] sm:$0xff]
        %v384 = vld [vmem:[%s1 + $0x60] sm:$0xff]
        %v385 = vld [vmem:[%s1 + $0x68] sm:$0xff]
        %v386 = vld [vmem:[%s1 + $0x70] sm:$0xff]
        %v387 = vld [vmem:[%s1 + $0x78] sm:$0xff]
        %v388 = vld [vmem:[%s1 + $0x80] sm:$0xff]
        %v389 = vld [vmem:[%s1 + $0x88] sm:$0xff]
        %v390 = vld [vmem:[%s1 + $0x90] sm:$0xff]
        %v391 = vld [vmem:[%s1 + $0x98] sm:$0xff]
        %v392 = vld [vmem:[%s1 + $0xa0] sm:$0xff]
        %v393 = vld [vmem:[%s1 + $0xa8] sm:$0xff]
        %v394 = vld [vmem:[%s1 + $0xb0] sm:$0xff]
        %v395 = vld [vmem:[%s1 + $0xb8] sm:$0xff]
        %v396 = vld [vmem:[%s1 + $0xc0] sm:$0xff]
        %v397 = vld [vmem:[%s1 + $0xc8] sm:$0xff]
        %v398 = vld [vmem:[%s1 + $0xd0] sm:$0xff]
        %v399 = vld [vmem:[%s1 + $0xd8] sm:$0xff]
        %v400 = vld [vmem:[%s1 + $0xe0] sm:$0xff]
        %v401 = vld [vmem:[%s1 + $0xe8] sm:$0xff]
        %v402 = vld [vmem:[%s1 + $0xf0] sm:$0xff]
        %v403 = vld [vmem:[%s1 + $0xf8] sm:$0xff]
        %v404 = vld [vmem:[%s1 + $0x100] sm:$0xff]
        %v405 = vld [vmem:[%s1 + $0x108] sm:$0xff]
        %v406 = vld [vmem:[%s1 + $0x110] sm:$0xff]
        %v407 = vld [vmem:[%s1 + $0x118] sm:$0xff]
        %v408 = vld [vmem:[%s1 + $0x120] sm:$0xff]
        %v409 = vld [vmem:[%s1 + $0x128] sm:$0xff]
        %v410 = vld [vmem:[%s1 + $0x130] sm:$0xff]
        %v411 = vld [vmem:[%s1 + $0x138] sm:$0xff]
        %v412 = vld [vmem:[%s1 + $0x140] sm:$0xff]
        %v413 = vld [vmem:[%s1 + $0x148] sm:$0xff]
        %v414 = vld [vmem:[%s1 + $0x150] sm:$0xff]
        %v415 = vld [vmem:[%s1 + $0x158] sm:$0xff]
        %v416 = vld [vmem:[%s1 + $0x160] sm:$0xff]
        %v417 = vld [vmem:[%s1 + $0x168] sm:$0xff]
        %v418 = vld [vmem:[%s1 + $0x170] sm:$0xff]
        %v419 = vld [vmem:[%s1 + $0x178] sm:$0xff]
        %v420 = vld [vmem:[%s1 + $0x180] sm:$0xff]
        %v421 = vld [vmem:[%s1 + $0x188] sm:$0xff]
        %v422 = vld [vmem:[%s1 + $0x190] sm:$0xff]
        %v423 = vld [vmem:[%s1 + $0x198] sm:$0xff]
        %v424 = vld [vmem:[%s1 + $0x1a0] sm:$0xff]
        %v425 = vld [vmem:[%s1 + $0x1a8] sm:$0xff]
        %v426 = vld [vmem:[%s1 + $0x1b0] sm:$0xff]
        %v427 = vld [vmem:[%s1 + $0x1b8] sm:$0xff]
        %v428 = vld [vmem:[%s1 + $0x1c0] sm:$0xff]
        %v429 = vld [vmem:[%s1 + $0x1c8] sm:$0xff]
        %v430 = vld [vmem:[%s1 + $0x1d0] sm:$0xff]
        %v431 = vld [vmem:[%s1 + $0x1d8] sm:$0xff]
        %v432 = vld [vmem:[%s1 + $0x1e0] sm:$0xff]
        %v433 = vld [vmem:[%s1 + $0x1e8] sm:$0xff]
        %v434 = vld [vmem:[%s1 + $0x1f0] sm:$0xff]
        %v435 = vld [vmem:[%s1 + $0x1f8] sm:$0xff]
        %v436 = vld [vmem:[%s2] sm:$0x1]
        %v438 = vlaneseq
        %v439 = vshrl.u32 %v438, 7
        %v440 = vsub.s32 0, %v439
        %v441 = vrot.slane %v436, %v440
        %443 = vmatprep.subr.mxu0 0.0
        %444 = vmatpush1.msra.mxu0 %v372
        %445 = vmatprep.subr.mxu0 0.0
        %446 = vmatpush1.msra.mxu0 %v373
        %447 = vmatprep.subr.mxu0 0.0
        %448 = vmatpush1.msra.mxu0 %v374
        %449 = vmatprep.subr.mxu0 0.0
        %450 = vmatpush1.msra.mxu0 %v375
        %451 = vmatprep.subr.mxu0 0.0
        %452 = vmatpush1.msra.mxu0 %v376
        %453 = vmatprep.subr.mxu0 0.0
        %454 = vmatpush1.msra.mxu0 %v377
        %455 = vmatprep.subr.mxu0 0.0
        %456 = vmatpush1.msra.mxu0 %v378
        %457 = vmatprep.subr.mxu0 0.0
        %458 = vmatpush1.msra.mxu0 %v379
        %459 = vmatprep.subr.mxu0 0.0
        %460 = vmatpush1.msra.mxu0 %v380
        %461 = vmatprep.subr.mxu0 0.0
        %462 = vmatpush1.msra.mxu0 %v381
        %463 = vmatprep.subr.mxu0 0.0
        %464 = vmatpush1.msra.mxu0 %v382
        %465 = vmatprep.subr.mxu0 0.0
        %466 = vmatpush1.msra.mxu0 %v383
        %467 = vmatprep.subr.mxu0 0.0
        %468 = vmatpush1.msra.mxu0 %v384
        %469 = vmatprep.subr.mxu0 0.0
        %470 = vmatpush1.msra.mxu0 %v385
        %471 = vmatprep.subr.mxu0 0.0
        %472 = vmatpush1.msra.mxu0 %v386
        %473 = vmatprep.subr.mxu0 0.0
        %474 = vmatpush1.msra.mxu0 %v387
        %475 = vmatprep.subr.mxu0 0.0
        %476 = vmatpush1.msra.mxu0 %v388
        %477 = vmatprep.subr.mxu0 0.0
        %478 = vmatpush1.msra.mxu0 %v389
        %479 = vmatprep.subr.mxu0 0.0
        %480 = vmatpush1.msra.mxu0 %v390
        %481 = vmatprep.subr.mxu0 0.0
        %482 = vmatpush1.msra.mxu0 %v391
        %483 = vmatprep.subr.mxu0 0.0
        %484 = vmatpush1.msra.mxu0 %v392
        %485 = vmatprep.subr.mxu0 0.0
        %486 = vmatpush1.msra.mxu0 %v393
        %487 = vmatprep.subr.mxu0 0.0
        %488 = vmatpush1.msra.mxu0 %v394
        %489 = vmatprep.subr.mxu0 0.0
        %490 = vmatpush1.msra.mxu0 %v395
        %491 = vmatprep.subr.mxu0 0.0
        %492 = vmatpush1.msra.mxu0 %v396
        %493 = vmatprep.subr.mxu0 0.0
        %494 = vmatpush1.msra.mxu0 %v397
        %495 = vmatprep.subr.mxu0 0.0
        %496 = vmatpush1.msra.mxu0 %v398
        %497 = vmatprep.subr.mxu0 0.0
        %498 = vmatpush1.msra.mxu0 %v399
        %499 = vmatprep.subr.mxu0 0.0
        %500 = vmatpush1.msra.mxu0 %v400
        %501 = vmatprep.subr.mxu0 0.0
        %502 = vmatpush1.msra.mxu0 %v401
        %503 = vmatprep.subr.mxu0 0.0
        %504 = vmatpush1.msra.mxu0 %v402
        %505 = vmatprep.subr.mxu0 0.0
        %506 = vmatpush1.msra.mxu0 %v403
        %507 = vmatprep.mubr.f32.mxu0 %v309
        %508 = vmatmul.mubr.f32.gmra.mrb[0].mxu0 %v308
        %v509 = vpop.f32.mrb[0].mxu0
        %v510 = vadd.f32 %v441, %v509
        %v511 = vpop.f32.mrb[0].mxu0
        %512 = vmatprep.mubr.f32.mxu0 %v313
        %513 = vmatmul.mubr.f32.gmra.mrb[0].mxu0 %v312
        %v514 = vpop.f32.mrb[0].mxu0
        %v515 = vadd.f32 %v441, %v514
        %v516 = vpop.f32.mrb[0].mxu0
        %517 = vmatprep.mubr.f32.mxu0 %v317
        %518 = vmatmul.mubr.f32.gmra.mrb[0].mxu0 %v316
        %v519 = vpop.f32.mrb[0].mxu0
        %v520 = vadd.f32 %v441, %v519
        %v521 = vpop.f32.mrb[0].mxu0
        %522 = vmatprep.mubr.f32.mxu0 %v321
        %523 = vmatmul.mubr.f32.gmra.mrb[0].mxu0 %v320
        %v524 = vpop.f32.mrb[0].mxu0
        %v525 = vadd.f32 %v441, %v524
        %v526 = vpop.f32.mrb[0].mxu0
        %527 = vmatprep.mubr.f32.mxu0 %v325
        %528 = vmatmul.mubr.f32.gmra.mrb[0].mxu0 %v324
        %v529 = vpop.f32.mrb[0].mxu0
        %v530 = vadd.f32 %v441, %v529
        %v531 = vpop.f32.mrb[0].mxu0
        %532 = vmatprep.mubr.f32.mxu0 %v329
        %533 = vmatmul.mubr.f32.gmra.mrb[0].mxu0 %v328
        %v534 = vpop.f32.mrb[0].mxu0
        %v535 = vadd.f32 %v441, %v534
        %v536 = vpop.f32.mrb[0].mxu0
        %537 = vmatprep.mubr.f32.mxu0 %v333
        %538 = vmatmul.mubr.f32.gmra.mrb[0].mxu0 %v332
        %v539 = vpop.f32.mrb[0].mxu0
        %v540 = vadd.f32 %v441, %v539
        %v541 = vpop.f32.mrb[0].mxu0
        %542 = vmatprep.mubr.f32.mxu0 %v337
        %543 = vmatmul.mubr.f32.gmra.mrb[0].mxu0 %v336
        %v544 = vpop.f32.mrb[0].mxu0
        %v545 = vadd.f32 %v441, %v544
        %v546 = vpop.f32.mrb[0].mxu0
        %547 = vmatprep.mubr.f32.mxu0 %v341
        %548 = vmatmul.mubr.f32.gmra.mrb[0].mxu0 %v340
        %v549 = vpop.f32.mrb[0].mxu0
        %v550 = vadd.f32 %v441, %v549
        %v551 = vpop.f32.mrb[0].mxu0
        %552 = vmatprep.mubr.f32.mxu0 %v345
        %553 = vmatmul.mubr.f32.gmra.mrb[0].mxu0 %v344
        %v554 = vpop.f32.mrb[0].mxu0
        %v555 = vadd.f32 %v441, %v554
        %v556 = vpop.f32.mrb[0].mxu0
        %557 = vmatprep.mubr.f32.mxu0 %v349
        %558 = vmatmul.mubr.f32.gmra.mrb[0].mxu0 %v348
        %v559 = vpop.f32.mrb[0].mxu0
        %v560 = vadd.f32 %v441, %v559
        %v561 = vpop.f32.mrb[0].mxu0
        %562 = vmatprep.mubr.f32.mxu0 %v353
        %563 = vmatmul.mubr.f32.gmra.mrb[0].mxu0 %v352
        %v564 = vpop.f32.mrb[0].mxu0
        %v565 = vadd.f32 %v441, %v564
        %v566 = vpop.f32.mrb[0].mxu0
        %567 = vmatprep.mubr.f32.mxu0 %v357
        %568 = vmatmul.mubr.f32.gmra.mrb[0].mxu0 %v356
        %v569 = vpop.f32.mrb[0].mxu0
        %v570 = vadd.f32 %v441, %v569
        %v571 = vpop.f32.mrb[0].mxu0
        %572 = vmatprep.mubr.f32.mxu0 %v361
        %573 = vmatmul.mubr.f32.gmra.mrb[0].mxu0 %v360
        %v574 = vpop.f32.mrb[0].mxu0
        %v575 = vadd.f32 %v441, %v574
        %v576 = vpop.f32.mrb[0].mxu0
        %577 = vmatprep.mubr.f32.mxu0 %v365
        %578 = vmatmul.mubr.f32.gmra.mrb[0].mxu0 %v364
        %v579 = vpop.f32.mrb[0].mxu0
        %v580 = vadd.f32 %v441, %v579
        %v581 = vpop.f32.mrb[0].mxu0
        %582 = vmatprep.mubr.f32.mxu0 %v369
        %583 = vmatmul.mubr.f32.gmra.mrb[0].mxu0 %v368
        %v584 = vpop.f32.mrb[0].mxu0
        %v585 = vadd.f32 %v441, %v584
        %v586 = vpop.f32.mrb[0].mxu0
        %587 = vdwg.mxu0
        %588 = vmatprep.subr.mxu0 0.0
        %589 = vmatpush1.msra.mxu0 %v404
        %590 = vmatprep.subr.mxu0 0.0
        %591 = vmatpush1.msra.mxu0 %v405
        %592 = vmatprep.subr.mxu0 0.0
        %593 = vmatpush1.msra.mxu0 %v406
        %594 = vmatprep.subr.mxu0 0.0
        %595 = vmatpush1.msra.mxu0 %v407
        %596 = vmatprep.subr.mxu0 0.0
        %597 = vmatpush1.msra.mxu0 %v408
        %598 = vmatprep.subr.mxu0 0.0
        %599 = vmatpush1.msra.mxu0 %v409
        %600 = vmatprep.subr.mxu0 0.0
        %601 = vmatpush1.msra.mxu0 %v410
        %602 = vmatprep.subr.mxu0 0.0
        %603 = vmatpush1.msra.mxu0 %v411
        %604 = vmatprep.subr.mxu0 0.0
        %605 = vmatpush1.msra.mxu0 %v412
        %606 = vmatprep.subr.mxu0 0.0
        %607 = vmatpush1.msra.mxu0 %v413
        %608 = vmatprep.subr.mxu0 0.0
        %609 = vmatpush1.msra.mxu0 %v414
        %610 = vmatprep.subr.mxu0 0.0
        %611 = vmatpush1.msra.mxu0 %v415
        %612 = vmatprep.subr.mxu0 0.0
        %613 = vmatpush1.msra.mxu0 %v416
        %614 = vmatprep.subr.mxu0 0.0
        %615 = vmatpush1.msra.mxu0 %v417
        %616 = vmatprep.subr.mxu0 0.0
        %617 = vmatpush1.msra.mxu0 %v418
        %618 = vmatprep.subr.mxu0 0.0
        %619 = vmatpush1.msra.mxu0 %v419
        %620 = vmatprep.subr.mxu0 0.0
        %621 = vmatpush1.msra.mxu0 %v420
        %622 = vmatprep.subr.mxu0 0.0
        %623 = vmatpush1.msra.mxu0 %v421
        %624 = vmatprep.subr.mxu0 0.0
        %625 = vmatpush1.msra.mxu0 %v422
        %626 = vmatprep.subr.mxu0 0.0
        %627 = vmatpush1.msra.mxu0 %v423
        %628 = vmatprep.subr.mxu0 0.0
        %629 = vmatpush1.msra.mxu0 %v424
        %630 = vmatprep.subr.mxu0 0.0
        %631 = vmatpush1.msra.mxu0 %v425
        %632 = vmatprep.subr.mxu0 0.0
        %633 = vmatpush1.msra.mxu0 %v426
        %634 = vmatprep.subr.mxu0 0.0
        %635 = vmatpush1.msra.mxu0 %v427
        %636 = vmatprep.subr.mxu0 0.0
        %637 = vmatpush1.msra.mxu0 %v428
        %638 = vmatprep.subr.mxu0 0.0
        %639 = vmatpush1.msra.mxu0 %v429
        %640 = vmatprep.subr.mxu0 0.0
        %641 = vmatpush1.msra.mxu0 %v430
        %642 = vmatprep.subr.mxu0 0.0
        %643 = vmatpush1.msra.mxu0 %v431
        %644 = vmatprep.subr.mxu0 0.0
        %645 = vmatpush1.msra.mxu0 %v432
        %646 = vmatprep.subr.mxu0 0.0
        %647 = vmatpush1.msra.mxu0 %v433
        %648 = vmatprep.subr.mxu0 0.0
        %649 = vmatpush1.msra.mxu0 %v434
        %650 = vmatprep.subr.mxu0 0.0
        %651 = vmatpush1.msra.mxu0 %v435
        %652 = vmatprep.mubr.f32.mxu0 %v311
        %653 = vmatmul.mubr.f32.gmra.mrb[0].mxu0 %v310
        %v654 = vpop.f32.mrb[0].mxu0
        %v655 = vadd.f32 %v510, %v654
        %v656 = vpop.f32.mrb[0].mxu0
        %657 = vmatprep.mubr.f32.mxu0 %v315
        %658 = vmatmul.mubr.f32.gmra.mrb[0].mxu0 %v314
        %v659 = vpop.f32.mrb[0].mxu0
        %v660 = vadd.f32 %v515, %v659
        %v661 = vpop.f32.mrb[0].mxu0
        %662 = vmatprep.mubr.f32.mxu0 %v319
        %663 = vmatmul.mubr.f32.gmra.mrb[0].mxu0 %v318
        %v664 = vpop.f32.mrb[0].mxu0
        %v665 = vadd.f32 %v520, %v664
        %v666 = vpop.f32.mrb[0].mxu0
        %667 = vmatprep.mubr.f32.mxu0 %v323
        %668 = vmatmul.mubr.f32.gmra.mrb[0].mxu0 %v322
        %v669 = vpop.f32.mrb[0].mxu0
        %v670 = vadd.f32 %v525, %v669
        %v671 = vpop.f32.mrb[0].mxu0
        %672 = vmatprep.mubr.f32.mxu0 %v327
        %673 = vmatmul.mubr.f32.gmra.mrb[0].mxu0 %v326
        %v674 = vpop.f32.mrb[0].mxu0
        %v675 = vadd.f32 %v530, %v674
        %v676 = vpop.f32.mrb[0].mxu0
        %677 = vmatprep.mubr.f32.mxu0 %v331
        %678 = vmatmul.mubr.f32.gmra.mrb[0].mxu0 %v330
        %v679 = vpop.f32.mrb[0].mxu0
        %v680 = vadd.f32 %v535, %v679
        %v681 = vpop.f32.mrb[0].mxu0
        %682 = vmatprep.mubr.f32.mxu0 %v335
        %683 = vmatmul.mubr.f32.gmra.mrb[0].mxu0 %v334
        %v684 = vpop.f32.mrb[0].mxu0
        %v685 = vadd.f32 %v540, %v684
        %v686 = vpop.f32.mrb[0].mxu0
        %687 = vmatprep.mubr.f32.mxu0 %v339
        %688 = vmatmul.mubr.f32.gmra.mrb[0].mxu0 %v338
        %v689 = vpop.f32.mrb[0].mxu0
        %v690 = vadd.f32 %v545, %v689
        %v691 = vpop.f32.mrb[0].mxu0
        %692 = vmatprep.mubr.f32.mxu0 %v343
        %693 = vmatmul.mubr.f32.gmra.mrb[0].mxu0 %v342
        %v694 = vpop.f32.mrb[0].mxu0
        %v695 = vadd.f32 %v550, %v694
        %v696 = vpop.f32.mrb[0].mxu0
        %697 = vmatprep.mubr.f32.mxu0 %v347
        %698 = vmatmul.mubr.f32.gmra.mrb[0].mxu0 %v346
        %v699 = vpop.f32.mrb[0].mxu0
        %v700 = vadd.f32 %v555, %v699
        %v701 = vpop.f32.mrb[0].mxu0
        %702 = vmatprep.mubr.f32.mxu0 %v351
        %703 = vmatmul.mubr.f32.gmra.mrb[0].mxu0 %v350
        %v704 = vpop.f32.mrb[0].mxu0
        %v705 = vadd.f32 %v560, %v704
        %v706 = vpop.f32.mrb[0].mxu0
        %707 = vmatprep.mubr.f32.mxu0 %v355
        %708 = vmatmul.mubr.f32.gmra.mrb[0].mxu0 %v354
        %v709 = vpop.f32.mrb[0].mxu0
        %v710 = vadd.f32 %v565, %v709
        %v711 = vpop.f32.mrb[0].mxu0
        %712 = vmatprep.mubr.f32.mxu0 %v359
        %713 = vmatmul.mubr.f32.gmra.mrb[0].mxu0 %v358
        %v714 = vpop.f32.mrb[0].mxu0
        %v715 = vadd.f32 %v570, %v714
        %v716 = vpop.f32.mrb[0].mxu0
        %717 = vmatprep.mubr.f32.mxu0 %v363
        %718 = vmatmul.mubr.f32.gmra.mrb[0].mxu0 %v362
        %v719 = vpop.f32.mrb[0].mxu0
        %v720 = vadd.f32 %v575, %v719
        %v721 = vpop.f32.mrb[0].mxu0
        %722 = vmatprep.mubr.f32.mxu0 %v367
        %723 = vmatmul.mubr.f32.gmra.mrb[0].mxu0 %v366
        %v724 = vpop.f32.mrb[0].mxu0
        %v725 = vadd.f32 %v580, %v724
        %v726 = vpop.f32.mrb[0].mxu0
        %727 = vmatprep.mubr.f32.mxu0 %v371
        %728 = vmatmul.mubr.f32.gmra.mrb[0].mxu0 %v370
        %v729 = vpop.f32.mrb[0].mxu0
        %v730 = vadd.f32 %v585, %v729
        %v731 = vpop.f32.mrb[0].mxu0
        %732 = vdwg.mxu0
        %v733 = vtanh.pop %v655
        %v734 = vtanh.pop %v660
        %v735 = vtanh.pop %v665
        %v736 = vtanh.pop %v670
        %v737 = vtanh.pop %v675
        %v738 = vtanh.pop %v680
        %v739 = vtanh.pop %v685
        %v740 = vtanh.pop %v690
        %v741 = vtanh.pop %v695
        %v742 = vtanh.pop %v700
        %v743 = vtanh.pop %v705
        %v744 = vtanh.pop %v710
        %v745 = vtanh.pop %v715
        %v746 = vtanh.pop %v720
        %v747 = vtanh.pop %v725
        %v748 = vtanh.pop %v730
        %v749 = vld [vmem:[%s3] sm:$0xff]
        %v750 = vld [vmem:[%s3 + $0x8] sm:$0xff]
        %v751 = vld [vmem:[%s3 + $0x10] sm:$0xff]
        %v752 = vld [vmem:[%s3 + $0x18] sm:$0xff]
        %v753 = vld [vmem:[%s3 + $0x20] sm:$0xff]
        %v754 = vld [vmem:[%s3 + $0x28] sm:$0xff]
        %v755 = vld [vmem:[%s3 + $0x30] sm:$0xff]
        %v756 = vld [vmem:[%s3 + $0x38] sm:$0xff]
        %v757 = vld [vmem:[%s4] sm:$0x1]
        %v759 = vlaneseq
        %v760 = vshrl.u32 %v759, 7
        %v761 = vsub.s32 0, %v760
        %v762 = vrot.slane %v757, %v761
        %vm764 = vcmask 523264
        %v766 = vsel %vm764, %v733, 0
        %v769 = vsel %vm764, %v734, 0
        %v772 = vsel %vm764, %v735, 0
        %v775 = vsel %vm764, %v736, 0
        %v778 = vsel %vm764, %v737, 0
        %v781 = vsel %vm764, %v738, 0
        %v784 = vsel %vm764, %v739, 0
        %v787 = vsel %vm764, %v740, 0
        %v790 = vsel %vm764, %v741, 0
        %v793 = vsel %vm764, %v742, 0
        %v796 = vsel %vm764, %v743, 0
        %v799 = vsel %vm764, %v744, 0
        %v802 = vsel %vm764, %v745, 0
        %v805 = vsel %vm764, %v746, 0
        %v808 = vsel %vm764, %v747, 0
        %v811 = vsel %vm764, %v748, 0
        %813 = vmatprep.subr.mxu0 0.0
        %814 = vmatpush1.msra.mxu0 %v749
        %815 = vmatprep.subr.mxu0 0.0
        %816 = vmatpush1.msra.mxu0 %v750
        %817 = vmatprep.subr.mxu0 0.0
        %818 = vmatpush1.msra.mxu0 %v751
        %819 = vmatprep.subr.mxu0 0.0
        %820 = vmatpush1.msra.mxu0 %v752
        %821 = vmatprep.subr.mxu0 0.0
        %822 = vmatpush1.msra.mxu0 %v753
        %823 = vmatprep.subr.mxu0 0.0
        %824 = vmatpush1.msra.mxu0 %v754
        %825 = vmatprep.subr.mxu0 0.0
        %826 = vmatpush1.msra.mxu0 %v755
        %827 = vmatprep.subr.mxu0 0.0
        %828 = vmatpush1.msra.mxu0 %v756
        %829 = vmatprep.subr.mxu0 0.0
        %830 = vmatpush1.msra.mxu0 0.0
        %831 = vmatprep.subr.mxu0 0.0
        %832 = vmatpush1.msra.mxu0 0.0
        %833 = vmatprep.subr.mxu0 0.0
        %834 = vmatpush1.msra.mxu0 0.0
        %835 = vmatprep.subr.mxu0 0.0
        %836 = vmatpush1.msra.mxu0 0.0
        %837 = vmatprep.subr.mxu0 0.0
        %838 = vmatpush1.msra.mxu0 0.0
        %839 = vmatprep.subr.mxu0 0.0
        %840 = vmatpush1.msra.mxu0 0.0
        %841 = vmatprep.subr.mxu0 0.0
        %842 = vmatpush1.msra.mxu0 0.0
        %843 = vmatprep.subr.mxu0 0.0
        %844 = vmatpush1.msra.mxu0 0.0
        %845 = vmatprep.subr.mxu0 0.0
        %846 = vmatpush1.msra.mxu0 0.0
        %847 = vmatprep.subr.mxu0 0.0
        %848 = vmatpush1.msra.mxu0 0.0
        %849 = vmatprep.subr.mxu0 0.0
        %850 = vmatpush1.msra.mxu0 0.0
        %851 = vmatprep.subr.mxu0 0.0
        %852 = vmatpush1.msra.mxu0 0.0
        %853 = vmatprep.subr.mxu0 0.0
        %854 = vmatpush1.msra.mxu0 0.0
        %855 = vmatprep.subr.mxu0 0.0
        %856 = vmatpush1.msra.mxu0 0.0
        %857 = vmatprep.subr.mxu0 0.0
        %858 = vmatpush1.msra.mxu0 0.0
        %859 = vmatprep.subr.mxu0 0.0
        %860 = vmatpush1.msra.mxu0 0.0
        %861 = vmatprep.subr.mxu0 0.0
        %862 = vmatpush1.msra.mxu0 0.0
        %863 = vmatprep.subr.mxu0 0.0
        %864 = vmatpush1.msra.mxu0 0.0
        %865 = vmatprep.subr.mxu0 0.0
        %866 = vmatpush1.msra.mxu0 0.0
        %867 = vmatprep.subr.mxu0 0.0
        %868 = vmatpush1.msra.mxu0 0.0
        %869 = vmatprep.subr.mxu0 0.0
        %870 = vmatpush1.msra.mxu0 0.0
        %871 = vmatprep.subr.mxu0 0.0
        %872 = vmatpush1.msra.mxu0 0.0
        %873 = vmatprep.subr.mxu0 0.0
        %874 = vmatpush1.msra.mxu0 0.0
        %875 = vmatprep.subr.mxu0 0.0
        %876 = vmatpush1.msra.mxu0 0.0
        %877 = vmatprep.mubr.f32.mxu0 0.0
        %878 = vmatmul.mubr.f32.gmra.mrb[0].mxu0 %v766
        %v879 = vpop.f32.mrb[0].mxu0
        %v880 = vadd.f32 %v762, %v879
        %v881 = vpop.f32.mrb[0].mxu0
        %882 = vmatprep.mubr.f32.mxu0 0.0
        %883 = vmatmul.mubr.f32.gmra.mrb[0].mxu0 %v769
        %v884 = vpop.f32.mrb[0].mxu0
        %v885 = vadd.f32 %v762, %v884
        %v886 = vpop.f32.mrb[0].mxu0
        %887 = vmatprep.mubr.f32.mxu0 0.0
        %888 = vmatmul.mubr.f32.gmra.mrb[0].mxu0 %v772
        %v889 = vpop.f32.mrb[0].mxu0
        %v890 = vadd.f32 %v762, %v889
        %v891 = vpop.f32.mrb[0].mxu0
        %892 = vmatprep.mubr.f32.mxu0 0.0
        %893 = vmatmul.mubr.f32.gmra.mrb[0].mxu0 %v775
        %v894 = vpop.f32.mrb[0].mxu0
        %v895 = vadd.f32 %v762, %v894
        %v896 = vpop.f32.mrb[0].mxu0
        %897 = vmatprep.mubr.f32.mxu0 0.0
        %898 = vmatmul.mubr.f32.gmra.mrb[0].mxu0 %v778
        %v899 = vpop.f32.mrb[0].mxu0
        %v900 = vadd.f32 %v762, %v899
        %v901 = vpop.f32.mrb[0].mxu0
        %902 = vmatprep.mubr.f32.mxu0 0.0
        %903 = vmatmul.mubr.f32.gmra.mrb[0].mxu0 %v781
        %v904 = vpop.f32.mrb[0].mxu0
        %v905 = vadd.f32 %v762, %v904
        %v906 = vpop.f32.mrb[0].mxu0
        %907 = vmatprep.mubr.f32.mxu0 0.0
        %908 = vmatmul.mubr.f32.gmra.mrb[0].mxu0 %v784
        %v909 = vpop.f32.mrb[0].mxu0
        %v910 = vadd.f32 %v762, %v909
        %v911 = vpop.f32.mrb[0].mxu0
        %912 = vmatprep.mubr.f32.mxu0 0.0
        %913 = vmatmul.mubr.f32.gmra.mrb[0].mxu0 %v787
        %v914 = vpop.f32.mrb[0].mxu0
        %v915 = vadd.f32 %v762, %v914
        %v916 = vpop.f32.mrb[0].mxu0
        %917 = vmatprep.mubr.f32.mxu0 0.0
        %918 = vmatmul.mubr.f32.gmra.mrb[0].mxu0 %v790
        %v919 = vpop.f32.mrb[0].mxu0
        %v920 = vadd.f32 %v762, %v919
        %v921 = vpop.f32.mrb[0].mxu0
        %922 = vmatprep.mubr.f32.mxu0 0.0
        %923 = vmatmul.mubr.f32.gmra.mrb[0].mxu0 %v793
        %v924 = vpop.f32.mrb[0].mxu0
        %v925 = vadd.f32 %v762, %v924
        %v926 = vpop.f32.mrb[0].mxu0
        %927 = vmatprep.mubr.f32.mxu0 0.0
        %928 = vmatmul.mubr.f32.gmra.mrb[0].mxu0 %v796
        %v929 = vpop.f32.mrb[0].mxu0
        %v930 = vadd.f32 %v762, %v929
        %v931 = vpop.f32.mrb[0].mxu0
        %932 = vmatprep.mubr.f32.mxu0 0.0
        %933 = vmatmul.mubr.f32.gmra.mrb[0].mxu0 %v799
        %v934 = vpop.f32.mrb[0].mxu0
        %v935 = vadd.f32 %v762, %v934
        %v936 = vpop.f32.mrb[0].mxu0
        %937 = vmatprep.mubr.f32.mxu0 0.0
        %938 = vmatmul.mubr.f32.gmra.mrb[0].mxu0 %v802
        %v939 = vpop.f32.mrb[0].mxu0
        %v940 = vadd.f32 %v762, %v939
        %v941 = vpop.f32.mrb[0].mxu0
        %942 = vmatprep.mubr.f32.mxu0 0.0
        %943 = vmatmul.mubr.f32.gmra.mrb[0].mxu0 %v805
        %v944 = vpop.f32.mrb[0].mxu0
        %v945 = vadd.f32 %v762, %v944
        %v946 = vpop.f32.mrb[0].mxu0
        %947 = vmatprep.mubr.f32.mxu0 0.0
        %948 = vmatmul.mubr.f32.gmra.mrb[0].mxu0 %v808
        %v949 = vpop.f32.mrb[0].mxu0
        %v950 = vadd.f32 %v762, %v949
        %v951 = vpop.f32.mrb[0].mxu0
        %952 = vmatprep.mubr.f32.mxu0 0.0
        %953 = vmatmul.mubr.f32.gmra.mrb[0].mxu0 %v811
        %v954 = vpop.f32.mrb[0].mxu0
        %v955 = vadd.f32 %v762, %v954
        %v956 = vpop.f32.mrb[0].mxu0
        %957 = vdwg.mxu0
        %v958 = vtanh.pop %v880
        %v959 = vtanh.pop %v885
        %v960 = vtanh.pop %v890
        %v961 = vtanh.pop %v895
        %v962 = vtanh.pop %v900
        %v963 = vtanh.pop %v905
        %v964 = vtanh.pop %v910
        %v965 = vtanh.pop %v915
        %v966 = vtanh.pop %v920
        %v967 = vtanh.pop %v925
        %v968 = vtanh.pop %v930
        %v969 = vtanh.pop %v935
        %v970 = vtanh.pop %v940
        %v971 = vtanh.pop %v945
        %v972 = vtanh.pop %v950
        %v973 = vtanh.pop %v955
        %v974 = vld [vmem:[%s5] sm:$0xff]
        %v975 = vld [vmem:[%s6] sm:$0x1]
        %v977 = vlaneseq
        %v978 = vshrl.u32 %v977, 7
        %v979 = vsub.s32 0, %v978
        %v980 = vrot.slane %v975, %v979
        %vm982 = vcmask 64512
        %v984 = vsel %vm982, %v958, 0
        %v987 = vsel %vm982, %v959, 0
        %v990 = vsel %vm982, %v960, 0
        %v993 = vsel %vm982, %v961, 0
        %v996 = vsel %vm982, %v962, 0
        %v999 = vsel %vm982, %v963, 0
        %v1002 = vsel %vm982, %v964, 0
        %v1005 = vsel %vm982, %v965, 0
        %v1008 = vsel %vm982, %v966, 0
        %v1011 = vsel %vm982, %v967, 0
        %v1014 = vsel %vm982, %v968, 0
        %v1017 = vsel %vm982, %v969, 0
        %v1020 = vsel %vm982, %v970, 0
        %v1023 = vsel %vm982, %v971, 0
        %v1026 = vsel %vm982, %v972, 0
        %v1029 = vsel %vm982, %v973, 0
        %1031 = vmatprep.subr.mxu0 0.0
        %1032 = vmatpush1.msra.mxu0 %v974
        %1033 = vmatprep.subr.mxu0 0.0
        %1034 = vmatpush1.msra.mxu0 0.0
        %1035 = vmatprep.subr.mxu0 0.0
        %1036 = vmatpush1.msra.mxu0 0.0
        %1037 = vmatprep.subr.mxu0 0.0
        %1038 = vmatpush1.msra.mxu0 0.0
        %1039 = vmatprep.subr.mxu0 0.0
        %1040 = vmatpush1.msra.mxu0 0.0
        %1041 = vmatprep.subr.mxu0 0.0
        %1042 = vmatpush1.msra.mxu0 0.0
        %1043 = vmatprep.subr.mxu0 0.0
        %1044 = vmatpush1.msra.mxu0 0.0
        %1045 = vmatprep.subr.mxu0 0.0
        %1046 = vmatpush1.msra.mxu0 0.0
        %1047 = vmatprep.subr.mxu0 0.0
        %1048 = vmatpush1.msra.mxu0 0.0
        %1049 = vmatprep.subr.mxu0 0.0
        %1050 = vmatpush1.msra.mxu0 0.0
        %1051 = vmatprep.subr.mxu0 0.0
        %1052 = vmatpush1.msra.mxu0 0.0
        %1053 = vmatprep.subr.mxu0 0.0
        %1054 = vmatpush1.msra.mxu0 0.0
        %1055 = vmatprep.subr.mxu0 0.0
        %1056 = vmatpush1.msra.mxu0 0.0
        %1057 = vmatprep.subr.mxu0 0.0
        %1058 = vmatpush1.msra.mxu0 0.0
        %1059 = vmatprep.subr.mxu0 0.0
        %1060 = vmatpush1.msra.mxu0 0.0
        %1061 = vmatprep.subr.mxu0 0.0
        %1062 = vmatpush1.msra.mxu0 0.0
        %1063 = vmatprep.subr.mxu0 0.0
        %1064 = vmatpush1.msra.mxu0 0.0
        %1065 = vmatprep.subr.mxu0 0.0
        %1066 = vmatpush1.msra.mxu0 0.0
        %1067 = vmatprep.subr.mxu0 0.0
        %1068 = vmatpush1.msra.mxu0 0.0
        %1069 = vmatprep.subr.mxu0 0.0
        %1070 = vmatpush1.msra.mxu0 0.0
        %1071 = vmatprep.subr.mxu0 0.0
        %1072 = vmatpush1.msra.mxu0 0.0
        %1073 = vmatprep.subr.mxu0 0.0
        %1074 = vmatpush1.msra.mxu0 0.0
        %1075 = vmatprep.subr.mxu0 0.0
        %1076 = vmatpush1.msra.mxu0 0.0
        %1077 = vmatprep.subr.mxu0 0.0
        %1078 = vmatpush1.msra.mxu0 0.0
        %1079 = vmatprep.subr.mxu0 0.0
        %1080 = vmatpush1.msra.mxu0 0.0
        %1081 = vmatprep.subr.mxu0 0.0
        %1082 = vmatpush1.msra.mxu0 0.0
        %1083 = vmatprep.subr.mxu0 0.0
        %1084 = vmatpush1.msra.mxu0 0.0
        %1085 = vmatprep.subr.mxu0 0.0
        %1086 = vmatpush1.msra.mxu0 0.0
        %1087 = vmatprep.subr.mxu0 0.0
        %1088 = vmatpush1.msra.mxu0 0.0
        %1089 = vmatprep.subr.mxu0 0.0
        %1090 = vmatpush1.msra.mxu0 0.0
        %1091 = vmatprep.subr.mxu0 0.0
        %1092 = vmatpush1.msra.mxu0 0.0
        %1093 = vmatprep.subr.mxu0 0.0
        %1094 = vmatpush1.msra.mxu0 0.0
        %1095 = vmatprep.mubr.f32.mxu0 0.0
        %1096 = vmatmul.mubr.f32.gmra.mrb[0].mxu0 %v984
        %v1097 = vpop.f32.mrb[0].mxu0
        %v1098 = vadd.f32 %v980, %v1097
        %v1099 = vpop.f32.mrb[0].mxu0
        %1100 = vmatprep.mubr.f32.mxu0 0.0
        %1101 = vmatmul.mubr.f32.gmra.mrb[0].mxu0 %v987
        %v1102 = vpop.f32.mrb[0].mxu0
        %v1103 = vadd.f32 %v980, %v1102
        %v1104 = vpop.f32.mrb[0].mxu0
        %1105 = vmatprep.mubr.f32.mxu0 0.0
        %1106 = vmatmul.mubr.f32.gmra.mrb[0].mxu0 %v990
        %v1107 = vpop.f32.mrb[0].mxu0
        %v1108 = vadd.f32 %v980, %v1107
        %v1109 = vpop.f32.mrb[0].mxu0
        %1110 = vmatprep.mubr.f32.mxu0 0.0
        %1111 = vmatmul.mubr.f32.gmra.mrb[0].mxu0 %v993
        %v1112 = vpop.f32.mrb[0].mxu0
        %v1113 = vadd.f32 %v980, %v1112
        %v1114 = vpop.f32.mrb[0].mxu0
        %1115 = vmatprep.mubr.f32.mxu0 0.0
        %1116 = vmatmul.mubr.f32.gmra.mrb[0].mxu0 %v996
        %v1117 = vpop.f32.mrb[0].mxu0
        %v1118 = vadd.f32 %v980, %v1117
        %v1119 = vpop.f32.mrb[0].mxu0
        %1120 = vmatprep.mubr.f32.mxu0 0.0
        %1121 = vmatmul.mubr.f32.gmra.mrb[0].mxu0 %v999
        %v1122 = vpop.f32.mrb[0].mxu0
        %v1123 = vadd.f32 %v980, %v1122
        %v1124 = vpop.f32.mrb[0].mxu0
        %1125 = vmatprep.mubr.f32.mxu0 0.0
        %1126 = vmatmul.mubr.f32.gmra.mrb[0].mxu0 %v1002
        %v1127 = vpop.f32.mrb[0].mxu0
        %v1128 = vadd.f32 %v980, %v1127
        %v1129 = vpop.f32.mrb[0].mxu0
        %1130 = vmatprep.mubr.f32.mxu0 0.0
        %1131 = vmatmul.mubr.f32.gmra.mrb[0].mxu0 %v1005
        %v1132 = vpop.f32.mrb[0].mxu0
        %v1133 = vadd.f32 %v980, %v1132
        %v1134 = vpop.f32.mrb[0].mxu0
        %1135 = vmatprep.mubr.f32.mxu0 0.0
        %1136 = vmatmul.mubr.f32.gmra.mrb[0].mxu0 %v1008
        %v1137 = vpop.f32.mrb[0].mxu0
        %v1138 = vadd.f32 %v980, %v1137
        %v1139 = vpop.f32.mrb[0].mxu0
        %1140 = vmatprep.mubr.f32.mxu0 0.0
        %1141 = vmatmul.mubr.f32.gmra.mrb[0].mxu0 %v1011
        %v1142 = vpop.f32.mrb[0].mxu0
        %v1143 = vadd.f32 %v980, %v1142
        %v1144 = vpop.f32.mrb[0].mxu0
        %1145 = vmatprep.mubr.f32.mxu0 0.0
        %1146 = vmatmul.mubr.f32.gmra.mrb[0].mxu0 %v1014
        %v1147 = vpop.f32.mrb[0].mxu0
        %v1148 = vadd.f32 %v980, %v1147
        %v1149 = vpop.f32.mrb[0].mxu0
        %1150 = vmatprep.mubr.f32.mxu0 0.0
        %1151 = vmatmul.mubr.f32.gmra.mrb[0].mxu0 %v1017
        %v1152 = vpop.f32.mrb[0].mxu0
        %v1153 = vadd.f32 %v980, %v1152
        %v1154 = vpop.f32.mrb[0].mxu0
        %1155 = vmatprep.mubr.f32.mxu0 0.0
        %1156 = vmatmul.mubr.f32.gmra.mrb[0].mxu0 %v1020
        %v1157 = vpop.f32.mrb[0].mxu0
        %v1158 = vadd.f32 %v980, %v1157
        %v1159 = vpop.f32.mrb[0].mxu0
        %1160 = vmatprep.mubr.f32.mxu0 0.0
        %1161 = vmatmul.mubr.f32.gmra.mrb[0].mxu0 %v1023
        %v1162 = vpop.f32.mrb[0].mxu0
        %v1163 = vadd.f32 %v980, %v1162
        %v1164 = vpop.f32.mrb[0].mxu0
        %1165 = vmatprep.mubr.f32.mxu0 0.0
        %1166 = vmatmul.mubr.f32.gmra.mrb[0].mxu0 %v1026
        %v1167 = vpop.f32.mrb[0].mxu0
        %v1168 = vadd.f32 %v980, %v1167
        %v1169 = vpop.f32.mrb[0].mxu0
        %1170 = vmatprep.mubr.f32.mxu0 0.0
        %1171 = vmatmul.mubr.f32.gmra.mrb[0].mxu0 %v1029
        %v1172 = vpop.f32.mrb[0].mxu0
        %v1173 = vadd.f32 %v980, %v1172
        %v1174 = vpop.f32.mrb[0].mxu0
        %1175 = vdwg.mxu0
        %vm1176 = vcmask 15360
        %1177 = vst.msk [vmem:[%s285] sm:$0xff] %vm1176, %v1098
        %1178 = vst.msk [vmem:[%s285 + $0x8] sm:$0xff] %vm1176, %v1103
        %1179 = vst.msk [vmem:[%s285 + $0x10] sm:$0xff] %vm1176, %v1108
        %1180 = vst.msk [vmem:[%s285 + $0x18] sm:$0xff] %vm1176, %v1113
        %1181 = vst.msk [vmem:[%s285 + $0x20] sm:$0xff] %vm1176, %v1118
        %1182 = vst.msk [vmem:[%s285 + $0x28] sm:$0xff] %vm1176, %v1123
        %1183 = vst.msk [vmem:[%s285 + $0x30] sm:$0xff] %vm1176, %v1128
        %1184 = vst.msk [vmem:[%s285 + $0x38] sm:$0xff] %vm1176, %v1133
        %1185 = vst.msk [vmem:[%s285 + $0x40] sm:$0xff] %vm1176, %v1138
        %1186 = vst.msk [vmem:[%s285 + $0x48] sm:$0xff] %vm1176, %v1143
        %1187 = vst.msk [vmem:[%s285 + $0x50] sm:$0xff] %vm1176, %v1148
        %1188 = vst.msk [vmem:[%s285 + $0x58] sm:$0xff] %vm1176, %v1153
        %1189 = vst.msk [vmem:[%s285 + $0x60] sm:$0xff] %vm1176, %v1158
        %1190 = vst.msk [vmem:[%s285 + $0x68] sm:$0xff] %vm1176, %v1163
        %1191 = vst.msk [vmem:[%s285 + $0x70] sm:$0xff] %vm1176, %v1168
        %1192 = vst.msk [vmem:[%s285 + $0x78] sm:$0xff] %vm1176, %v1173
        %s1193 = sand.u32 %s178, 1
        %s1194 = sand.u32 %s178, 1
        %s1195 = smul.addr %s1194, 128
        %s1196 = scalar_lea.vmem [#allocation2], %s1195
        // Predicated region
        $region49: #{tpu_custom_call.1} parent=47 // pred_check
          %p1197 = pneg %p188
        $region50: #{tpu_custom_call.1} parent=47 // pred_check_branch
          %1199 = sbr.rel (%p1197) target = $region52
        $region51: #{tpu_custom_call.1} parent=47 // pred_region
          %s1200 = smul.u32 16, %s18
          %s1201 = ssub.s32 25, %s1200
          %p1202 = scmp.lt.s32.totalorder %s1201, 16
          %s1203 = scalar_select %p1202, %s1201, 16
          %s1204 = smul.u32 128, %s1203
          %p1205 = scmp.ne.s32.totalorder 0, %s1204
          %s1206 = smul.addr %s1200, 8
          %s1207 = scalar_lea.vmem %s7, %s1206
          // Predicated region
          $region53: #{tpu_custom_call.1} parent=51 // pred_check
            %p1208 = pneg %p1205
          $region54: #{tpu_custom_call.1} parent=51 // pred_check_branch
            %1210 = sbr.rel (%p1208) target = $region56
          $region55: #{tpu_custom_call.1} parent=51 // pred_region
            // Predicated region
            $region57: #{tpu_custom_call.1} parent=55 // pred_check
              _
            $region58: #{tpu_custom_call.1} parent=55 // pred_check_branch
              %1212 = sbr.rel (0) target = $region60
            $region59: #{tpu_custom_call.1} parent=55 // pred_region
              // Predicated region
              $region79: #{tpu_custom_call.1} parent=59 // pred_check
                _
              $region80: #{tpu_custom_call.1} parent=59 // pred_check_branch
                %1291 = sbr.rel (0) target = $region82
              $region81: #{tpu_custom_call.1} parent=59 // pred_region
                %s1292 = sshrl.u32 %s1203, 4
                // While loop
                $region83: #{tpu_custom_call.1} parent=81 // loop_pre_header
                  _
                $region84: #{tpu_custom_call.1} parent=81 // loop_header
                  %s1294 = sphi 0, %s1296
                  %p1295 = scmp.ge.s32.totalorder %s1294, %s1292
                  %s1299 = sphi 0, %s1336
                  %s1300 = sphi %s1196, %s1339
                  %s1301 = sphi %s1207, %s1340
                $region85: #{tpu_custom_call.1} parent=81 // loop_header_branch
                  %1298 = sbr.rel (%p1295) target = $region89
                $region86: #{tpu_custom_call.1} parent=81 // loop_body
                  %v1302 = vld [vmem:[%s1300] sm:$0xff]
                  %1303 = vst [vmem:[%s1301] sm:$0xff] %v1302
                  %v1304 = vld [vmem:[%s1300 + $0x8] sm:$0xff]
                  %1305 = vst [vmem:[%s1301 + $0x8] sm:$0xff] %v1304
                  %v1306 = vld [vmem:[%s1300 + $0x10] sm:$0xff]
                  %1307 = vst [vmem:[%s1301 + $0x10] sm:$0xff] %v1306
                  %v1308 = vld [vmem:[%s1300 + $0x18] sm:$0xff]
                  %1309 = vst [vmem:[%s1301 + $0x18] sm:$0xff] %v1308
                  %v1310 = vld [vmem:[%s1300 + $0x20] sm:$0xff]
                  %1311 = vst [vmem:[%s1301 + $0x20] sm:$0xff] %v1310
                  %v1312 = vld [vmem:[%s1300 + $0x28] sm:$0xff]
                  %1313 = vst [vmem:[%s1301 + $0x28] sm:$0xff] %v1312
                  %v1314 = vld [vmem:[%s1300 + $0x30] sm:$0xff]
                  %1315 = vst [vmem:[%s1301 + $0x30] sm:$0xff] %v1314
                  %v1316 = vld [vmem:[%s1300 + $0x38] sm:$0xff]
                  %1317 = vst [vmem:[%s1301 + $0x38] sm:$0xff] %v1316
                  %v1318 = vld [vmem:[%s1300 + $0x40] sm:$0xff]
                  %1319 = vst [vmem:[%s1301 + $0x40] sm:$0xff] %v1318
                  %v1320 = vld [vmem:[%s1300 + $0x48] sm:$0xff]
                  %1321 = vst [vmem:[%s1301 + $0x48] sm:$0xff] %v1320
                  %v1322 = vld [vmem:[%s1300 + $0x50] sm:$0xff]
                  %1323 = vst [vmem:[%s1301 + $0x50] sm:$0xff] %v1322
                  %v1324 = vld [vmem:[%s1300 + $0x58] sm:$0xff]
                  %1325 = vst [vmem:[%s1301 + $0x58] sm:$0xff] %v1324
                  %v1326 = vld [vmem:[%s1300 + $0x60] sm:$0xff]
                  %1327 = vst [vmem:[%s1301 + $0x60] sm:$0xff] %v1326
                  %v1328 = vld [vmem:[%s1300 + $0x68] sm:$0xff]
                  %1329 = vst [vmem:[%s1301 + $0x68] sm:$0xff] %v1328
                  %v1330 = vld [vmem:[%s1300 + $0x70] sm:$0xff]
                  %1331 = vst [vmem:[%s1301 + $0x70] sm:$0xff] %v1330
                  %v1332 = vld [vmem:[%s1300 + $0x78] sm:$0xff]
                  %1333 = vst [vmem:[%s1301 + $0x78] sm:$0xff] %v1332
                  %s1334 = sadd.s32 1, %s1299
                  %p1335 = scmp.ge.s32.totalorder %s1334, %s1292
                  %s1336 = scalar_select %p1335, 0, %s1334
                  %s1337 = smul.u32 %s1336, 128
                  %s1338 = smul.u32 %s1336, 128
                  %s1339 = scalar_lea.vmem %s1196, %s1337 [#allocation2]
                  %s1340 = scalar_lea.vmem %s1207, %s1338
                $region87: #{tpu_custom_call.1} parent=81 // loop_footer
                  %s1296 = sadd.s32 %s1294, 1
                $region88: #{tpu_custom_call.1} parent=81 // loop_footer_branch
                  %1293 = sbr.rel target = $region84
                $region89: #{tpu_custom_call.1} parent=81 // loop_exit
                  _
                %s1341 = sshrl.u32 %s1203, 4
                %s1342 = sand.u32 %s1203, 15
                %s1343 = smul.u32 %s1341, 16
                %s1344 = smul.u32 8, %s1343
                %s1345 = scalar_lea.vmem %s1196, %s1344 [#allocation2]
                %s1346 = smul.u32 8, %s1343
                %s1347 = scalar_lea.vmem %s1207, %s1346
                // While loop
                $region90: #{tpu_custom_call.1} parent=81 // loop_pre_header
                  _
                $region91: #{tpu_custom_call.1} parent=81 // loop_header
                  %s1349 = sphi 0, %s1351
                  %p1350 = scmp.ge.s32.totalorder %s1349, %s1342
                  %s1354 = sphi 0, %s1361
                  %s1355 = sphi %s1345, %s1364
                  %s1356 = sphi %s1347, %s1365
                $region92: #{tpu_custom_call.1} parent=81 // loop_header_branch
                  %1353 = sbr.rel (%p1350) target = $region96
                $region93: #{tpu_custom_call.1} parent=81 // loop_body
                  %v1357 = vld [vmem:[%s1355] sm:$0xff]
                  %1358 = vst [vmem:[%s1356] sm:$0xff] %v1357
                  %s1359 = sadd.s32 1, %s1354
                  %p1360 = scmp.ge.s32.totalorder %s1359, %s1342
                  %s1361 = scalar_select %p1360, 0, %s1359
                  %s1362 = smul.u32 %s1361, 8
                  %s1363 = smul.u32 %s1361, 8
                  %s1364 = scalar_lea.vmem %s1345, %s1362 [#allocation2]
                  %s1365 = scalar_lea.vmem %s1347, %s1363
                $region94: #{tpu_custom_call.1} parent=81 // loop_footer
                  %s1351 = sadd.s32 %s1349, 1
                $region95: #{tpu_custom_call.1} parent=81 // loop_footer_branch
                  %1348 = sbr.rel target = $region91
                $region96: #{tpu_custom_call.1} parent=81 // loop_exit
                  _
              $region82: #{tpu_custom_call.1} parent=59 // pred_fallthru
                _
              // Predicated region
              $region97: #{tpu_custom_call.1} parent=59 // pred_check
                _
              $region98: #{tpu_custom_call.1} parent=59 // pred_check_branch
                %1367 = sbr.rel target = $region100
              $region99: #{tpu_custom_call.1} parent=59 // pred_region
                _
              $region100: #{tpu_custom_call.1} parent=59 // pred_fallthru
                _
            $region60: #{tpu_custom_call.1} parent=55 // pred_fallthru
              _
            // Predicated region
            $region61: #{tpu_custom_call.1} parent=55 // pred_check
              _
            $region62: #{tpu_custom_call.1} parent=55 // pred_check_branch
              %1214 = sbr.rel target = $region64
            $region63: #{tpu_custom_call.1} parent=55 // pred_region
              %s1216 = sshrl.u32 %s1203, 4
              // While loop
              $region65: #{tpu_custom_call.1} parent=63 // loop_pre_header
                _
              $region66: #{tpu_custom_call.1} parent=63 // loop_header
                %s1218 = sphi 0, %s1220
                %p1219 = scmp.ge.s32.totalorder %s1218, %s1216
                %s1223 = sphi 0, %s1260
                %s1224 = sphi %s1196, %s1263
                %s1225 = sphi %s1207, %s1264
              $region67: #{tpu_custom_call.1} parent=63 // loop_header_branch
                %1222 = sbr.rel (%p1219) target = $region71
              $region68: #{tpu_custom_call.1} parent=63 // loop_body
                %v1226 = vld [vmem:[%s1224] sm:$0xff]
                %1227 = vst [vmem:[%s1225] sm:$0xff] %v1226
                %v1228 = vld [vmem:[%s1224 + $0x8] sm:$0xff]
                %1229 = vst [vmem:[%s1225 + $0x8] sm:$0xff] %v1228
                %v1230 = vld [vmem:[%s1224 + $0x10] sm:$0xff]
                %1231 = vst [vmem:[%s1225 + $0x10] sm:$0xff] %v1230
                %v1232 = vld [vmem:[%s1224 + $0x18] sm:$0xff]
                %1233 = vst [vmem:[%s1225 + $0x18] sm:$0xff] %v1232
                %v1234 = vld [vmem:[%s1224 + $0x20] sm:$0xff]
                %1235 = vst [vmem:[%s1225 + $0x20] sm:$0xff] %v1234
                %v1236 = vld [vmem:[%s1224 + $0x28] sm:$0xff]
                %1237 = vst [vmem:[%s1225 + $0x28] sm:$0xff] %v1236
                %v1238 = vld [vmem:[%s1224 + $0x30] sm:$0xff]
                %1239 = vst [vmem:[%s1225 + $0x30] sm:$0xff] %v1238
                %v1240 = vld [vmem:[%s1224 + $0x38] sm:$0xff]
                %1241 = vst [vmem:[%s1225 + $0x38] sm:$0xff] %v1240
                %v1242 = vld [vmem:[%s1224 + $0x40] sm:$0xff]
                %1243 = vst [vmem:[%s1225 + $0x40] sm:$0xff] %v1242
                %v1244 = vld [vmem:[%s1224 + $0x48] sm:$0xff]
                %1245 = vst [vmem:[%s1225 + $0x48] sm:$0xff] %v1244
                %v1246 = vld [vmem:[%s1224 + $0x50] sm:$0xff]
                %1247 = vst [vmem:[%s1225 + $0x50] sm:$0xff] %v1246
                %v1248 = vld [vmem:[%s1224 + $0x58] sm:$0xff]
                %1249 = vst [vmem:[%s1225 + $0x58] sm:$0xff] %v1248
                %v1250 = vld [vmem:[%s1224 + $0x60] sm:$0xff]
                %1251 = vst [vmem:[%s1225 + $0x60] sm:$0xff] %v1250
                %v1252 = vld [vmem:[%s1224 + $0x68] sm:$0xff]
                %1253 = vst [vmem:[%s1225 + $0x68] sm:$0xff] %v1252
                %v1254 = vld [vmem:[%s1224 + $0x70] sm:$0xff]
                %1255 = vst [vmem:[%s1225 + $0x70] sm:$0xff] %v1254
                %v1256 = vld [vmem:[%s1224 + $0x78] sm:$0xff]
                %1257 = vst [vmem:[%s1225 + $0x78] sm:$0xff] %v1256
                %s1258 = sadd.s32 1, %s1223
                %p1259 = scmp.ge.s32.totalorder %s1258, %s1216
                %s1260 = scalar_select %p1259, 0, %s1258
                %s1261 = smul.u32 %s1260, 128
                %s1262 = smul.u32 %s1260, 128
                %s1263 = scalar_lea.vmem %s1196, %s1261 [#allocation2]
                %s1264 = scalar_lea.vmem %s1207, %s1262
              $region69: #{tpu_custom_call.1} parent=63 // loop_footer
                %s1220 = sadd.s32 %s1218, 1
              $region70: #{tpu_custom_call.1} parent=63 // loop_footer_branch
                %1217 = sbr.rel target = $region66
              $region71: #{tpu_custom_call.1} parent=63 // loop_exit
                _
              %s1265 = sshrl.u32 %s1203, 4
              %s1266 = sand.u32 %s1203, 15
              %s1267 = smul.u32 %s1265, 16
              %s1268 = smul.u32 8, %s1267
              %s1269 = scalar_lea.vmem %s1196, %s1268 [#allocation2]
              %s1270 = smul.u32 8, %s1267
              %s1271 = scalar_lea.vmem %s1207, %s1270
              // While loop
              $region72: #{tpu_custom_call.1} parent=63 // loop_pre_header
                _
              $region73: #{tpu_custom_call.1} parent=63 // loop_header
                %s1273 = sphi 0, %s1275
                %p1274 = scmp.ge.s32.totalorder %s1273, %s1266
                %s1278 = sphi 0, %s1285
                %s1279 = sphi %s1269, %s1288
                %s1280 = sphi %s1271, %s1289
              $region74: #{tpu_custom_call.1} parent=63 // loop_header_branch
                %1277 = sbr.rel (%p1274) target = $region78
              $region75: #{tpu_custom_call.1} parent=63 // loop_body
                %v1281 = vld [vmem:[%s1279] sm:$0xff]
                %1282 = vst [vmem:[%s1280] sm:$0xff] %v1281
                %s1283 = sadd.s32 1, %s1278
                %p1284 = scmp.ge.s32.totalorder %s1283, %s1266
                %s1285 = scalar_select %p1284, 0, %s1283
                %s1286 = smul.u32 %s1285, 8
                %s1287 = smul.u32 %s1285, 8
                %s1288 = scalar_lea.vmem %s1269, %s1286 [#allocation2]
                %s1289 = scalar_lea.vmem %s1271, %s1287
              $region76: #{tpu_custom_call.1} parent=63 // loop_footer
                %s1275 = sadd.s32 %s1273, 1
              $region77: #{tpu_custom_call.1} parent=63 // loop_footer_branch
                %1272 = sbr.rel target = $region73
              $region78: #{tpu_custom_call.1} parent=63 // loop_exit
                _
            $region64: #{tpu_custom_call.1} parent=55 // pred_fallthru
              _
          $region56: #{tpu_custom_call.1} parent=51 // pred_fallthru
            _
          %1368 = vnop
        $region52: #{tpu_custom_call.1} parent=47 // pred_fallthru
          _
      $region48: #{tpu_custom_call.1} parent=5 // pred_fallthru
        _
      %p1369 = scmp.le.s32.totalorder 2, %s13
      // Predicated region
      $region101: #{tpu_custom_call.1} parent=5 // pred_check
        %p1370 = pneg %p1369
      $region102: #{tpu_custom_call.1} parent=5 // pred_check_branch
        %1372 = sbr.rel (%p1370) target = $region104
      $region103: #{tpu_custom_call.1} parent=5 // pred_region
        %s1373 = ssub.s32 %s13, 2
        // Predicated region
        $region105: #{tpu_custom_call.1} parent=103 // pred_check
          %p1374 = pneg %p194
        $region106: #{tpu_custom_call.1} parent=103 // pred_check_branch
          %1376 = sbr.rel (%p1374) target = $region108
        $region107: #{tpu_custom_call.1} parent=103 // pred_region
          %s1377 = sand.u32 %s179, 1
          %s1378 = sand.u32 %s179, 1
          %s1379 = smul.addr %s1378, 128
          %s1380 = scalar_lea.vmem [#allocation2], %s1379
        $region108: #{tpu_custom_call.1} parent=103 // pred_fallthru
          _
      $region104: #{tpu_custom_call.1} parent=5 // pred_fallthru
        _
    $region6: #{tpu_custom_call.1} parent=1 // loop_footer
      %s17 = sadd.s32 1, %s13
    $region7: #{tpu_custom_call.1} parent=1 // loop_footer_branch
      %12 = sbr.rel target = $region3
    $region8: #{tpu_custom_call.1} parent=1 // loop_exit
      _

</llo_original>
